<compile_context>
chip_gen: v5e
topology: v5e:2x2
jax: 0.10.0
libtpu: 0.0.40
codegen_flags: <defaults>
</compile_context>

<pallas_src>
import jax
import jax.numpy as jnp
from jax.experimental import pallas as pl
from jax.experimental.pallas import tpu as pltpu
import math


# ----------------------------------------------------------------------------
# Fused kernel: proj -> tanh -> proj -> mask -> softmax -> weighted sum
# ----------------------------------------------------------------------------
def _mask_mlp_attention_kernel(key_ref, mask_ref, w1_ref, w2_ref, out_ref):
    # Shapes (all static):
    #   key_ref : [block_b, S*K]   lane-dense key tile
    #   mask_ref: [block_b, S]     int32 (nonzero == keep)
    #   w1_ref  : [K, U]           VMEM-resident
    #   w2_ref  : [1, U]           VMEM-resident (row form of the units->1 Linear)
    #   out_ref : [block_b, K]
    block_b, K = out_ref.shape
    S = mask_ref.shape[-1]

    w1 = w1_ref[...].astype(jnp.float32)                       # [K, U]
    w2 = w2_ref[...].astype(jnp.float32)                       # [1, U]
    mask = mask_ref[...]                                       # [block_b, S]

    # Lane-index row used to place each per-step score column into lane s of the
    # lane-dense [block_b, S] score matrix (pure VPU select, no relayout).
    lane_ids = jax.lax.broadcasted_iota(jnp.int32, (1, S), 1)  # [1, S]

    # ---- Pass 1: scores.  One MXU matmul per sequence position, M = block_b rows. ----
    scores = jnp.zeros((block_b, S), jnp.float32)
    for s in range(S):  # S is small & static (8); temporaries die every iteration
        key_s = key_ref[:, s * K:(s + 1) * K].astype(jnp.float32)          # [block_b, K]
        h_s = jnp.tanh(jnp.dot(key_s, w1, preferred_element_type=jnp.float32))  # [block_b, U]
        score_s = jnp.sum(h_s * w2, axis=-1, keepdims=True)                # [block_b, 1]
        scores = scores + jnp.where(lane_ids == s, score_s, 0.0)           # into lane s

    # ---- masked_fill_(~mask, -inf) + softmax over the sequence (lane) axis. ----
    scores = jnp.where(mask != 0, scores, -jnp.inf)            # all-masked row -> NaN (as in PyTorch)
    m = jnp.max(scores, axis=-1, keepdims=True)                # [block_b, 1]
    e = jnp.exp(scores - m)                                    # [block_b, S]; exp(-inf) = 0
    denom = jnp.sum(e, axis=-1, keepdims=True)                 # [block_b, 1]
    inv = pl.reciprocal(denom, approx=True)                    # EUP reciprocal
    inv = inv * (2.0 - denom * inv)                            # 1 NR step -> full f32 accuracy

    # ---- Pass 2: weighted sum over the sequence, normalized once at the end. ----
    acc = jnp.zeros((block_b, K), jnp.float32)
    for s in range(S):
        key_s = key_ref[:, s * K:(s + 1) * K].astype(jnp.float32)          # [block_b, K]
        acc = acc + e[:, s:s + 1] * key_s                      # lane-broadcast of e[:, s]

    out_ref[...] = (acc * inv).astype(out_ref.dtype)           # single dense store


# ----------------------------------------------------------------------------
# Wrapper
# ----------------------------------------------------------------------------
def _pick_block_b(batch):
    """Largest multiple-of-8 divisor of `batch` that is <= 512 and gives >= 2 grid steps."""
    if batch % 8 != 0:
        return batch                      # tiny / odd batches: single grid step
    d = min(512, batch)
    d -= d % 8
    while d >= 8:
        if batch % d == 0 and d < batch:
            return d
        d -= 8
    return batch


def mask_mlp_attention(key, mask, w1, w2, *, block_b=None):
    """key: [B, S, K] (f32 or bf16), mask: [B, S] bool/int, w1: [K, U], w2: [U, 1]/[1, U]/[U].

    Returns [B, K] (key.dtype), matching MaskMlpAttention.forward(key, mask).
    """
    B, S, K = key.shape
    Kw, U = w1.shape
    assert Kw == K, "w1 must be [key_size, units]"
    assert w2.size == U, "w2 must have `units` elements"

    if block_b is None:
        block_b = _pick_block_b(B)
    assert B % block_b == 0, "batch must be divisible by the batch tile"
    assert block_b == B or block_b % 8 == 0, "block_b must be B or a multiple of 8"

    # Lane-dense key view [B, S*K] (free reshape in XLA), compact [B, S] int32 mask,
    # and the second projection as a lane-dense [1, U] row.
    key2 = jnp.reshape(key, (B, S * K))
    mask2 = mask.astype(jnp.int32)
    w2_row = jnp.reshape(w2, (1, U))

    grid = (B // block_b,)

    return pl.pallas_call(
        _mask_mlp_attention_kernel,
        out_shape=jax.ShapeDtypeStruct((B, K), key.dtype),
        grid_spec=pltpu.PrefetchScalarGridSpec(
            num_scalar_prefetch=0,
            grid=grid,
            in_specs=[
                pl.BlockSpec((block_b, S * K), lambda b: (b, 0)),   # key, streamed per tile
                pl.BlockSpec((block_b, S), lambda b: (b, 0)),       # mask, streamed per tile
                pl.BlockSpec((K, U), lambda b: (0, 0)),             # w1, VMEM-resident
                pl.BlockSpec((1, U), lambda b: (0, 0)),             # w2 row, VMEM-resident
            ],
            out_specs=pl.BlockSpec((block_b, K), lambda b: (b, 0)),
        ),
        compiler_params=pltpu.CompilerParams(
            dimension_semantics=("parallel",),  # batch tiles shard across cores (v7x 2-TC)
        ),
    )(key2, mask2, w1, w2_row)


# ----------------------------------------------------------------------------
# Pure-JAX reference (mirrors the PyTorch module exactly)
# ----------------------------------------------------------------------------
def _ref_forward(key, mask, w1, w2):
    scores = jnp.squeeze(jnp.tanh(key @ w1) @ jnp.reshape(w2, (-1, 1)), -1)   # [B, S]
    scores = jnp.where(mask, scores, -jnp.inf)
    p = jax.nn.softmax(scores, axis=-1)
    return jnp.sum(p[..., None] * key, axis=1)                                # [B, K]


# ----------------------------------------------------------------------------
if __name__ == "__main__":
    # Small shapes consistent with the module: key_size=32, units=64, seq=8, batch=128
    # (batch large enough to exercise a multi-step "parallel" grid: block_b=64 -> grid=(2,)).
    B, S, KEY_SIZE, UNITS = 128, 8, 32, 64

    rng = jax.random.PRNGKey(0)
    k_key, k_mask, k_w1, k_w2 = jax.random.split(rng, 4)

    key = jax.random.normal(k_key, (B, S, KEY_SIZE), jnp.float32)

    # Random boolean mask; keep at least one valid position per row (all-masked rows
    # would be NaN in PyTorch too).
    mask = jax.random.bernoulli(k_mask, 0.7, (B, S))
    mask = mask.at[:, 0].set(True)

    # PyTorch-Linear-style uniform init (weights stored transposed:
    # w1 = [key_size, units], w2 = [units, 1]).
    bound1 = 1.0 / math.sqrt(KEY_SIZE)
    w1 = jax.random.uniform(k_w1, (KEY_SIZE, UNITS), jnp.float32, -bound1, bound1)
    bound2 = 1.0 / math.sqrt(UNITS)
    w2 = jax.random.uniform(k_w2, (UNITS, 1), jnp.float32, -bound2, bound2)

    fwd = jax.jit(mask_mlp_attention)
    out = jax.block_until_ready(fwd(key, mask, w1, w2))

    # Correctness check against the pure-JAX reference.
    ref = _ref_forward(key, mask, w1, w2)
    assert out.shape == (B, KEY_SIZE)
    assert jnp.allclose(out, ref, rtol=1e-3, atol=1e-3), "mismatch vs reference"

    print("KERNEL_OK")
</pallas_src>

<mosaic_0001>
module attributes {stable_mosaic.version = 11 : i64} {
  func.func @_mask_mlp_attention_kernel(%arg0: i32, %arg1: memref<64x256xf32, #tpu.memory_space<vmem>>, %arg2: memref<64x8xi32, #tpu.memory_space<vmem>>, %arg3: memref<32x64xf32, #tpu.memory_space<vmem>>, %arg4: memref<1x64xf32, #tpu.memory_space<vmem>>, %arg5: memref<64x32xf32, #tpu.memory_space<vmem>>) attributes {dimension_semantics = [#tpu.dimension_semantics<parallel>], iteration_bounds = array<i64: 2>, scalar_prefetch = 0 : i64, scratch_operands = 0 : i64, tpu.core_type = #tpu.core_type<tc>, window_params = [{transform_indices = @transform_0, window_bounds = array<i64: 64, 256>}, {transform_indices = @transform_1, window_bounds = array<i64: 64, 8>}, {pipeline_mode = #tpu.pipeline_mode<synchronous>, transform_indices = @transform_2, window_bounds = array<i64: 32, 64>}, {pipeline_mode = #tpu.pipeline_mode<synchronous>, transform_indices = @transform_3, window_bounds = array<i64: 1, 64>}, {transform_indices = @transform_4, window_bounds = array<i64: 64, 32>}]} {
    %c0 = arith.constant 0 : index
    %c0_0 = arith.constant 0 : index
    %0 = vector.load %arg3[%c0, %c0_0] : memref<32x64xf32, #tpu.memory_space<vmem>>, vector<32x64xf32>
    %c0_1 = arith.constant 0 : index
    %c0_2 = arith.constant 0 : index
    %1 = vector.load %arg4[%c0_1, %c0_2] : memref<1x64xf32, #tpu.memory_space<vmem>>, vector<1x64xf32>
    %c0_3 = arith.constant 0 : index
    %c0_4 = arith.constant 0 : index
    %2 = vector.load %arg2[%c0_3, %c0_4] : memref<64x8xi32, #tpu.memory_space<vmem>>, vector<64x8xi32>
    %3 = tpu.iota {dimensions = array<i32: 1>} : vector<1x8xi32>
    %cst = arith.constant 0.000000e+00 : f32
    %4 = vector.broadcast %cst : f32 to vector<64x8xf32>
    %c0_5 = arith.constant 0 : index
    %c0_6 = arith.constant 0 : index
    %5 = vector.load %arg1[%c0_5, %c0_6] : memref<64x256xf32, #tpu.memory_space<vmem>>, vector<64x32xf32>
    %cst_7 = arith.constant dense<0.000000e+00> : vector<64x64xf32>
    %6 = tpu.matmul %5, %0, %cst_7 {dimension_numbers = #tpu.dot_dimension_numbers<[1], [0], [0], [1], [0, 0, 1, 1], [], []>} : vector<64x32xf32>, vector<32x64xf32>, vector<64x64xf32> -> vector<64x64xf32>
    %7 = math.tanh %6 : vector<64x64xf32>
    %8 = vector.broadcast %1 : vector<1x64xf32> to vector<64x64xf32>
    %9 = arith.mulf %7, %8 : vector<64x64xf32>
    %cst_8 = arith.constant dense<0.000000e+00> : vector<64xf32>
    %10 = vector.multi_reduction <add>, %9, %cst_8 [1] : vector<64x64xf32> to vector<64xf32>
    %11 = vector.shape_cast %10 : vector<64xf32> to vector<64x1xf32>
    %c0_i32 = arith.constant 0 : i32
    %12 = vector.broadcast %c0_i32 : i32 to vector<1x8xi32>
    %13 = arith.cmpi eq, %3, %12 : vector<1x8xi32>
    %cst_9 = arith.constant 0.000000e+00 : f32
    %14 = vector.shape_cast %13 : vector<1x8xi1> to vector<1x8xi1>
    %15 = vector.broadcast %14 : vector<1x8xi1> to vector<64x8xi1>
    %16 = vector.shape_cast %11 : vector<64x1xf32> to vector<64x1xf32>
    %17 = vector.broadcast %16 : vector<64x1xf32> to vector<64x8xf32>
    %18 = vector.broadcast %cst_9 : f32 to vector<64x8xf32>
    %19 = arith.select %15, %17, %18 : vector<64x8xi1>, vector<64x8xf32>
    %20 = arith.addf %4, %19 : vector<64x8xf32>
    %c0_10 = arith.constant 0 : index
    %c32 = arith.constant 32 : index
    %21 = vector.load %arg1[%c0_10, %c32] : memref<64x256xf32, #tpu.memory_space<vmem>>, vector<64x32xf32>
    %cst_11 = arith.constant dense<0.000000e+00> : vector<64x64xf32>
    %22 = tpu.matmul %21, %0, %cst_11 {dimension_numbers = #tpu.dot_dimension_numbers<[1], [0], [0], [1], [0, 0, 1, 1], [], []>} : vector<64x32xf32>, vector<32x64xf32>, vector<64x64xf32> -> vector<64x64xf32>
    %23 = math.tanh %22 : vector<64x64xf32>
    %24 = vector.broadcast %1 : vector<1x64xf32> to vector<64x64xf32>
    %25 = arith.mulf %23, %24 : vector<64x64xf32>
    %cst_12 = arith.constant dense<0.000000e+00> : vector<64xf32>
    %26 = vector.multi_reduction <add>, %25, %cst_12 [1] : vector<64x64xf32> to vector<64xf32>
    %27 = vector.shape_cast %26 : vector<64xf32> to vector<64x1xf32>
    %c1_i32 = arith.constant 1 : i32
    %28 = vector.broadcast %c1_i32 : i32 to vector<1x8xi32>
    %29 = arith.cmpi eq, %3, %28 : vector<1x8xi32>
    %cst_13 = arith.constant 0.000000e+00 : f32
    %30 = vector.shape_cast %29 : vector<1x8xi1> to vector<1x8xi1>
    %31 = vector.broadcast %30 : vector<1x8xi1> to vector<64x8xi1>
    %32 = vector.shape_cast %27 : vector<64x1xf32> to vector<64x1xf32>
    %33 = vector.broadcast %32 : vector<64x1xf32> to vector<64x8xf32>
    %34 = vector.broadcast %cst_13 : f32 to vector<64x8xf32>
    %35 = arith.select %31, %33, %34 : vector<64x8xi1>, vector<64x8xf32>
    %36 = arith.addf %20, %35 : vector<64x8xf32>
    %c0_14 = arith.constant 0 : index
    %c64 = arith.constant 64 : index
    %37 = vector.load %arg1[%c0_14, %c64] : memref<64x256xf32, #tpu.memory_space<vmem>>, vector<64x32xf32>
    %cst_15 = arith.constant dense<0.000000e+00> : vector<64x64xf32>
    %38 = tpu.matmul %37, %0, %cst_15 {dimension_numbers = #tpu.dot_dimension_numbers<[1], [0], [0], [1], [0, 0, 1, 1], [], []>} : vector<64x32xf32>, vector<32x64xf32>, vector<64x64xf32> -> vector<64x64xf32>
    %39 = math.tanh %38 : vector<64x64xf32>
    %40 = vector.broadcast %1 : vector<1x64xf32> to vector<64x64xf32>
    %41 = arith.mulf %39, %40 : vector<64x64xf32>
    %cst_16 = arith.constant dense<0.000000e+00> : vector<64xf32>
    %42 = vector.multi_reduction <add>, %41, %cst_16 [1] : vector<64x64xf32> to vector<64xf32>
    %43 = vector.shape_cast %42 : vector<64xf32> to vector<64x1xf32>
    %c2_i32 = arith.constant 2 : i32
    %44 = vector.broadcast %c2_i32 : i32 to vector<1x8xi32>
    %45 = arith.cmpi eq, %3, %44 : vector<1x8xi32>
    %cst_17 = arith.constant 0.000000e+00 : f32
    %46 = vector.shape_cast %45 : vector<1x8xi1> to vector<1x8xi1>
    %47 = vector.broadcast %46 : vector<1x8xi1> to vector<64x8xi1>
    %48 = vector.shape_cast %43 : vector<64x1xf32> to vector<64x1xf32>
    %49 = vector.broadcast %48 : vector<64x1xf32> to vector<64x8xf32>
    %50 = vector.broadcast %cst_17 : f32 to vector<64x8xf32>
    %51 = arith.select %47, %49, %50 : vector<64x8xi1>, vector<64x8xf32>
    %52 = arith.addf %36, %51 : vector<64x8xf32>
    %c0_18 = arith.constant 0 : index
    %c96 = arith.constant 96 : index
    %53 = vector.load %arg1[%c0_18, %c96] : memref<64x256xf32, #tpu.memory_space<vmem>>, vector<64x32xf32>
    %cst_19 = arith.constant dense<0.000000e+00> : vector<64x64xf32>
    %54 = tpu.matmul %53, %0, %cst_19 {dimension_numbers = #tpu.dot_dimension_numbers<[1], [0], [0], [1], [0, 0, 1, 1], [], []>} : vector<64x32xf32>, vector<32x64xf32>, vector<64x64xf32> -> vector<64x64xf32>
    %55 = math.tanh %54 : vector<64x64xf32>
    %56 = vector.broadcast %1 : vector<1x64xf32> to vector<64x64xf32>
    %57 = arith.mulf %55, %56 : vector<64x64xf32>
    %cst_20 = arith.constant dense<0.000000e+00> : vector<64xf32>
    %58 = vector.multi_reduction <add>, %57, %cst_20 [1] : vector<64x64xf32> to vector<64xf32>
    %59 = vector.shape_cast %58 : vector<64xf32> to vector<64x1xf32>
    %c3_i32 = arith.constant 3 : i32
    %60 = vector.broadcast %c3_i32 : i32 to vector<1x8xi32>
    %61 = arith.cmpi eq, %3, %60 : vector<1x8xi32>
    %cst_21 = arith.constant 0.000000e+00 : f32
    %62 = vector.shape_cast %61 : vector<1x8xi1> to vector<1x8xi1>
    %63 = vector.broadcast %62 : vector<1x8xi1> to vector<64x8xi1>
    %64 = vector.shape_cast %59 : vector<64x1xf32> to vector<64x1xf32>
    %65 = vector.broadcast %64 : vector<64x1xf32> to vector<64x8xf32>
    %66 = vector.broadcast %cst_21 : f32 to vector<64x8xf32>
    %67 = arith.select %63, %65, %66 : vector<64x8xi1>, vector<64x8xf32>
    %68 = arith.addf %52, %67 : vector<64x8xf32>
    %c0_22 = arith.constant 0 : index
    %c128 = arith.constant 128 : index
    %69 = vector.load %arg1[%c0_22, %c128] : memref<64x256xf32, #tpu.memory_space<vmem>>, vector<64x32xf32>
    %cst_23 = arith.constant dense<0.000000e+00> : vector<64x64xf32>
    %70 = tpu.matmul %69, %0, %cst_23 {dimension_numbers = #tpu.dot_dimension_numbers<[1], [0], [0], [1], [0, 0, 1, 1], [], []>} : vector<64x32xf32>, vector<32x64xf32>, vector<64x64xf32> -> vector<64x64xf32>
    %71 = math.tanh %70 : vector<64x64xf32>
    %72 = vector.broadcast %1 : vector<1x64xf32> to vector<64x64xf32>
    %73 = arith.mulf %71, %72 : vector<64x64xf32>
    %cst_24 = arith.constant dense<0.000000e+00> : vector<64xf32>
    %74 = vector.multi_reduction <add>, %73, %cst_24 [1] : vector<64x64xf32> to vector<64xf32>
    %75 = vector.shape_cast %74 : vector<64xf32> to vector<64x1xf32>
    %c4_i32 = arith.constant 4 : i32
    %76 = vector.broadcast %c4_i32 : i32 to vector<1x8xi32>
    %77 = arith.cmpi eq, %3, %76 : vector<1x8xi32>
    %cst_25 = arith.constant 0.000000e+00 : f32
    %78 = vector.shape_cast %77 : vector<1x8xi1> to vector<1x8xi1>
    %79 = vector.broadcast %78 : vector<1x8xi1> to vector<64x8xi1>
    %80 = vector.shape_cast %75 : vector<64x1xf32> to vector<64x1xf32>
    %81 = vector.broadcast %80 : vector<64x1xf32> to vector<64x8xf32>
    %82 = vector.broadcast %cst_25 : f32 to vector<64x8xf32>
    %83 = arith.select %79, %81, %82 : vector<64x8xi1>, vector<64x8xf32>
    %84 = arith.addf %68, %83 : vector<64x8xf32>
    %c0_26 = arith.constant 0 : index
    %c160 = arith.constant 160 : index
    %85 = vector.load %arg1[%c0_26, %c160] : memref<64x256xf32, #tpu.memory_space<vmem>>, vector<64x32xf32>
    %cst_27 = arith.constant dense<0.000000e+00> : vector<64x64xf32>
    %86 = tpu.matmul %85, %0, %cst_27 {dimension_numbers = #tpu.dot_dimension_numbers<[1], [0], [0], [1], [0, 0, 1, 1], [], []>} : vector<64x32xf32>, vector<32x64xf32>, vector<64x64xf32> -> vector<64x64xf32>
    %87 = math.tanh %86 : vector<64x64xf32>
    %88 = vector.broadcast %1 : vector<1x64xf32> to vector<64x64xf32>
    %89 = arith.mulf %87, %88 : vector<64x64xf32>
    %cst_28 = arith.constant dense<0.000000e+00> : vector<64xf32>
    %90 = vector.multi_reduction <add>, %89, %cst_28 [1] : vector<64x64xf32> to vector<64xf32>
    %91 = vector.shape_cast %90 : vector<64xf32> to vector<64x1xf32>
    %c5_i32 = arith.constant 5 : i32
    %92 = vector.broadcast %c5_i32 : i32 to vector<1x8xi32>
    %93 = arith.cmpi eq, %3, %92 : vector<1x8xi32>
    %cst_29 = arith.constant 0.000000e+00 : f32
    %94 = vector.shape_cast %93 : vector<1x8xi1> to vector<1x8xi1>
    %95 = vector.broadcast %94 : vector<1x8xi1> to vector<64x8xi1>
    %96 = vector.shape_cast %91 : vector<64x1xf32> to vector<64x1xf32>
    %97 = vector.broadcast %96 : vector<64x1xf32> to vector<64x8xf32>
    %98 = vector.broadcast %cst_29 : f32 to vector<64x8xf32>
    %99 = arith.select %95, %97, %98 : vector<64x8xi1>, vector<64x8xf32>
    %100 = arith.addf %84, %99 : vector<64x8xf32>
    %c0_30 = arith.constant 0 : index
    %c192 = arith.constant 192 : index
    %101 = vector.load %arg1[%c0_30, %c192] : memref<64x256xf32, #tpu.memory_space<vmem>>, vector<64x32xf32>
    %cst_31 = arith.constant dense<0.000000e+00> : vector<64x64xf32>
    %102 = tpu.matmul %101, %0, %cst_31 {dimension_numbers = #tpu.dot_dimension_numbers<[1], [0], [0], [1], [0, 0, 1, 1], [], []>} : vector<64x32xf32>, vector<32x64xf32>, vector<64x64xf32> -> vector<64x64xf32>
    %103 = math.tanh %102 : vector<64x64xf32>
    %104 = vector.broadcast %1 : vector<1x64xf32> to vector<64x64xf32>
    %105 = arith.mulf %103, %104 : vector<64x64xf32>
    %cst_32 = arith.constant dense<0.000000e+00> : vector<64xf32>
    %106 = vector.multi_reduction <add>, %105, %cst_32 [1] : vector<64x64xf32> to vector<64xf32>
    %107 = vector.shape_cast %106 : vector<64xf32> to vector<64x1xf32>
    %c6_i32 = arith.constant 6 : i32
    %108 = vector.broadcast %c6_i32 : i32 to vector<1x8xi32>
    %109 = arith.cmpi eq, %3, %108 : vector<1x8xi32>
    %cst_33 = arith.constant 0.000000e+00 : f32
    %110 = vector.shape_cast %109 : vector<1x8xi1> to vector<1x8xi1>
    %111 = vector.broadcast %110 : vector<1x8xi1> to vector<64x8xi1>
    %112 = vector.shape_cast %107 : vector<64x1xf32> to vector<64x1xf32>
    %113 = vector.broadcast %112 : vector<64x1xf32> to vector<64x8xf32>
    %114 = vector.broadcast %cst_33 : f32 to vector<64x8xf32>
    %115 = arith.select %111, %113, %114 : vector<64x8xi1>, vector<64x8xf32>
    %116 = arith.addf %100, %115 : vector<64x8xf32>
    %c0_34 = arith.constant 0 : index
    %c224 = arith.constant 224 : index
    %117 = vector.load %arg1[%c0_34, %c224] : memref<64x256xf32, #tpu.memory_space<vmem>>, vector<64x32xf32>
    %cst_35 = arith.constant dense<0.000000e+00> : vector<64x64xf32>
    %118 = tpu.matmul %117, %0, %cst_35 {dimension_numbers = #tpu.dot_dimension_numbers<[1], [0], [0], [1], [0, 0, 1, 1], [], []>} : vector<64x32xf32>, vector<32x64xf32>, vector<64x64xf32> -> vector<64x64xf32>
    %119 = math.tanh %118 : vector<64x64xf32>
    %120 = vector.broadcast %1 : vector<1x64xf32> to vector<64x64xf32>
    %121 = arith.mulf %119, %120 : vector<64x64xf32>
    %cst_36 = arith.constant dense<0.000000e+00> : vector<64xf32>
    %122 = vector.multi_reduction <add>, %121, %cst_36 [1] : vector<64x64xf32> to vector<64xf32>
    %123 = vector.shape_cast %122 : vector<64xf32> to vector<64x1xf32>
    %c7_i32 = arith.constant 7 : i32
    %124 = vector.broadcast %c7_i32 : i32 to vector<1x8xi32>
    %125 = arith.cmpi eq, %3, %124 : vector<1x8xi32>
    %cst_37 = arith.constant 0.000000e+00 : f32
    %126 = vector.shape_cast %125 : vector<1x8xi1> to vector<1x8xi1>
    %127 = vector.broadcast %126 : vector<1x8xi1> to vector<64x8xi1>
    %128 = vector.shape_cast %123 : vector<64x1xf32> to vector<64x1xf32>
    %129 = vector.broadcast %128 : vector<64x1xf32> to vector<64x8xf32>
    %130 = vector.broadcast %cst_37 : f32 to vector<64x8xf32>
    %131 = arith.select %127, %129, %130 : vector<64x8xi1>, vector<64x8xf32>
    %132 = arith.addf %116, %131 : vector<64x8xf32>
    %c0_i32_38 = arith.constant 0 : i32
    %133 = vector.broadcast %c0_i32_38 : i32 to vector<64x8xi32>
    %134 = arith.cmpi ne, %2, %133 : vector<64x8xi32>
    %cst_39 = arith.constant 0xFF800000 : f32
    %135 = vector.broadcast %cst_39 : f32 to vector<64x8xf32>
    %136 = arith.select %134, %132, %135 : vector<64x8xi1>, vector<64x8xf32>
    %cst_40 = arith.constant dense<0xFF800000> : vector<64xf32>
    %137 = vector.multi_reduction <maximumf>, %136, %cst_40 [1] : vector<64x8xf32> to vector<64xf32>
    %138 = vector.shape_cast %137 : vector<64xf32> to vector<64x1xf32>
    %139 = vector.broadcast %138 : vector<64x1xf32> to vector<64x8xf32>
    %140 = arith.subf %136, %139 : vector<64x8xf32>
    %141 = math.exp %140 : vector<64x8xf32>
    %cst_41 = arith.constant dense<0.000000e+00> : vector<64xf32>
    %142 = vector.multi_reduction <add>, %141, %cst_41 [1] : vector<64x8xf32> to vector<64xf32>
    %143 = vector.shape_cast %142 : vector<64xf32> to vector<64x1xf32>
    %144 = tpu.reciprocal %143 {approx = true} : vector<64x1xf32> -> vector<64x1xf32>
    %145 = arith.mulf %143, %144 : vector<64x1xf32>
    %cst_42 = arith.constant 2.000000e+00 : f32
    %146 = vector.broadcast %cst_42 : f32 to vector<64x1xf32>
    %147 = arith.subf %146, %145 : vector<64x1xf32>
    %148 = arith.mulf %144, %147 : vector<64x1xf32>
    %cst_43 = arith.constant 0.000000e+00 : f32
    %149 = vector.broadcast %cst_43 : f32 to vector<64x32xf32>
    %c0_44 = arith.constant 0 : index
    %c0_45 = arith.constant 0 : index
    %150 = vector.load %arg1[%c0_44, %c0_45] : memref<64x256xf32, #tpu.memory_space<vmem>>, vector<64x32xf32>
    %151 = vector.extract_strided_slice %141 {offsets = [0, 0], sizes = [64, 1], strides = [1, 1]} : vector<64x8xf32> to vector<64x1xf32>
    %152 = vector.broadcast %151 : vector<64x1xf32> to vector<64x32xf32>
    %153 = arith.mulf %152, %150 : vector<64x32xf32>
    %154 = arith.addf %149, %153 : vector<64x32xf32>
    %c0_46 = arith.constant 0 : index
    %c32_47 = arith.constant 32 : index
    %155 = vector.load %arg1[%c0_46, %c32_47] : memref<64x256xf32, #tpu.memory_space<vmem>>, vector<64x32xf32>
    %156 = vector.extract_strided_slice %141 {offsets = [0, 1], sizes = [64, 1], strides = [1, 1]} : vector<64x8xf32> to vector<64x1xf32>
    %157 = vector.broadcast %156 : vector<64x1xf32> to vector<64x32xf32>
    %158 = arith.mulf %157, %155 : vector<64x32xf32>
    %159 = arith.addf %154, %158 : vector<64x32xf32>
    %c0_48 = arith.constant 0 : index
    %c64_49 = arith.constant 64 : index
    %160 = vector.load %arg1[%c0_48, %c64_49] : memref<64x256xf32, #tpu.memory_space<vmem>>, vector<64x32xf32>
    %161 = vector.extract_strided_slice %141 {offsets = [0, 2], sizes = [64, 1], strides = [1, 1]} : vector<64x8xf32> to vector<64x1xf32>
    %162 = vector.broadcast %161 : vector<64x1xf32> to vector<64x32xf32>
    %163 = arith.mulf %162, %160 : vector<64x32xf32>
    %164 = arith.addf %159, %163 : vector<64x32xf32>
    %c0_50 = arith.constant 0 : index
    %c96_51 = arith.constant 96 : index
    %165 = vector.load %arg1[%c0_50, %c96_51] : memref<64x256xf32, #tpu.memory_space<vmem>>, vector<64x32xf32>
    %166 = vector.extract_strided_slice %141 {offsets = [0, 3], sizes = [64, 1], strides = [1, 1]} : vector<64x8xf32> to vector<64x1xf32>
    %167 = vector.broadcast %166 : vector<64x1xf32> to vector<64x32xf32>
    %168 = arith.mulf %167, %165 : vector<64x32xf32>
    %169 = arith.addf %164, %168 : vector<64x32xf32>
    %c0_52 = arith.constant 0 : index
    %c128_53 = arith.constant 128 : index
    %170 = vector.load %arg1[%c0_52, %c128_53] : memref<64x256xf32, #tpu.memory_space<vmem>>, vector<64x32xf32>
    %171 = vector.extract_strided_slice %141 {offsets = [0, 4], sizes = [64, 1], strides = [1, 1]} : vector<64x8xf32> to vector<64x1xf32>
    %172 = vector.broadcast %171 : vector<64x1xf32> to vector<64x32xf32>
    %173 = arith.mulf %172, %170 : vector<64x32xf32>
    %174 = arith.addf %169, %173 : vector<64x32xf32>
    %c0_54 = arith.constant 0 : index
    %c160_55 = arith.constant 160 : index
    %175 = vector.load %arg1[%c0_54, %c160_55] : memref<64x256xf32, #tpu.memory_space<vmem>>, vector<64x32xf32>
    %176 = vector.extract_strided_slice %141 {offsets = [0, 5], sizes = [64, 1], strides = [1, 1]} : vector<64x8xf32> to vector<64x1xf32>
    %177 = vector.broadcast %176 : vector<64x1xf32> to vector<64x32xf32>
    %178 = arith.mulf %177, %175 : vector<64x32xf32>
    %179 = arith.addf %174, %178 : vector<64x32xf32>
    %c0_56 = arith.constant 0 : index
    %c192_57 = arith.constant 192 : index
    %180 = vector.load %arg1[%c0_56, %c192_57] : memref<64x256xf32, #tpu.memory_space<vmem>>, vector<64x32xf32>
    %181 = vector.extract_strided_slice %141 {offsets = [0, 6], sizes = [64, 1], strides = [1, 1]} : vector<64x8xf32> to vector<64x1xf32>
    %182 = vector.broadcast %181 : vector<64x1xf32> to vector<64x32xf32>
    %183 = arith.mulf %182, %180 : vector<64x32xf32>
    %184 = arith.addf %179, %183 : vector<64x32xf32>
    %c0_58 = arith.constant 0 : index
    %c224_59 = arith.constant 224 : index
    %185 = vector.load %arg1[%c0_58, %c224_59] : memref<64x256xf32, #tpu.memory_space<vmem>>, vector<64x32xf32>
    %186 = vector.extract_strided_slice %141 {offsets = [0, 7], sizes = [64, 1], strides = [1, 1]} : vector<64x8xf32> to vector<64x1xf32>
    %187 = vector.broadcast %186 : vector<64x1xf32> to vector<64x32xf32>
    %188 = arith.mulf %187, %185 : vector<64x32xf32>
    %189 = arith.addf %184, %188 : vector<64x32xf32>
    %190 = vector.broadcast %148 : vector<64x1xf32> to vector<64x32xf32>
    %191 = arith.mulf %189, %190 : vector<64x32xf32>
    %c0_60 = arith.constant 0 : index
    %c0_61 = arith.constant 0 : index
    %192 = vector.load %arg5[%c0_60, %c0_61] : memref<64x32xf32, #tpu.memory_space<vmem>>, vector<64x32xf32>
    tpu.vector_store %arg5[%c0_60, %c0_61], %191 {strides = array<i32>} : memref<64x32xf32, #tpu.memory_space<vmem>>, vector<64x32xf32>,
    return
  }
  func.func @transform_0(%arg0: i32) -> (i32, i32) {
    %c0_i32 = arith.constant 0 : i32
    %c0_i32_0 = arith.constant 0 : i32
    return %arg0, %c0_i32 : i32, i32
  }
  func.func @transform_1(%arg0: i32) -> (i32, i32) {
    %c0_i32 = arith.constant 0 : i32
    %c0_i32_0 = arith.constant 0 : i32
    return %arg0, %c0_i32 : i32, i32
  }
  func.func @transform_2(%arg0: i32) -> (i32, i32) {
    %c0_i32 = arith.constant 0 : i32
    %c0_i32_0 = arith.constant 0 : i32
    %c0_i32_1 = arith.constant 0 : i32
    return %c0_i32, %c0_i32_0 : i32, i32
  }
  func.func @transform_3(%arg0: i32) -> (i32, i32) {
    %c0_i32 = arith.constant 0 : i32
    %c0_i32_0 = arith.constant 0 : i32
    %c0_i32_1 = arith.constant 0 : i32
    return %c0_i32, %c0_i32_0 : i32, i32
  }
  func.func @transform_4(%arg0: i32) -> (i32, i32) {
    %c0_i32 = arith.constant 0 : i32
    %c0_i32_0 = arith.constant 0 : i32
    return %arg0, %c0_i32 : i32, i32
  }
}

</mosaic_0001>

<llo_original>
// kernel: mask_mlp_attention.1
$region0: #{mask_mlp_attention.1}
  #allocation0 [shape = 'u32[]', space=smem, size = 0x4, offset = 0x4, fixed_abs, tag = 'smem constant byte address 0x4 - core index']
  #allocation1 [shape = 'u32[72,128]{1,0:T(1,128)}', space=vmem, size = 0x9000, scoped, tag = 'internal scratch']
  %s0 = inlined_call_operand.vmem [shape: f32[128,256], index: 0, kind: input, shape index: {}]
  %s1 = inlined_call_operand.vmem [shape: s32[128,8], index: 1, kind: input, shape index: {}]
  %s2 = inlined_call_operand.vmem [shape: f32[32,64], index: 2, kind: input, shape index: {}]
  %s3 = inlined_call_operand.vmem [shape: f32[1,64], index: 3, kind: input, shape index: {}]
  %s4 = inlined_call_operand.vmem [shape: f32[128,32], index: 4, kind: output, shape index: {}]
  %s5 = sld [smem:[#allocation0]]
  $region49: #{mask_mlp_attention.1} parent=0
    _
  %s7 = ssub.s32 1, %s5
  %s8 = scalar_select 0, %s7, %s5
  loop: start=0, step=1, limit=4
  $region2: #{mask_mlp_attention.1} parent=0 // loop_pre_header
    _
  $region3: #{mask_mlp_attention.1} parent=0 // loop_header
    %s10 = sphi 0, %s14
    %p11 = scmp.ge.s32.totalorder %s10, 4
    %s20 = sphi 0, %s22
    %s23 = sphi 0, %s20
    %s24 = sphi 0, %s23
    %s40 = sphi 0, %s24
    %s46 = sphi 0, %s48
    %s49 = sphi 0, %s46
    %s50 = sphi 0, %s49
    %s66 = sphi 0, %s50
    %s70 = sphi 0, %s70
    %s72 = sphi 0, %s70
    %s73 = sphi 0, %s72
    %s87 = sphi 0, %s73
    %s91 = sphi 0, %s91
    %s93 = sphi 0, %s91
    %s94 = sphi 0, %s93
    %s108 = sphi 0, %s94
    %s114 = sphi 0, %s116
    %s117 = sphi 0, %s114
    %s118 = sphi 0, %s117
    %s134 = sphi 0, %s118
  $region4: #{mask_mlp_attention.1} parent=0 // loop_header_branch
    %13 = sbr.rel (%p11) target = $region8
  $region5: #{mask_mlp_attention.1} parent=0 // loop_body
    %s15 = ssub.s32 %s10, 1
    %s16 = ssub.s32 %s10, 2
    %s17 = sadd.s32 %s10, 1
    %s18 = ssub.s32 %s10, %s17
    %p19 = scmp.eq.s32.totalorder %s18, 0
    %s21 = sadd.s32 %s20, 1
    %s22 = scalar_select %p19, %s20, %s21
    %p25 = pneg %p19
    %p26 = scmp.eq.s32.totalorder %s10, 1
    %p27 = por %p25, %p26
    %p28 = scmp.ne.s32.totalorder %s20, %s23
    %p29 = scmp.eq.s32.totalorder %s10, 0
    %p30 = por %p28, %p29
    %p31 = scmp.ne.s32.totalorder %s20, %s23
    %p32 = scmp.eq.s32.totalorder %s15, 1
    %p33 = por %p31, %p32
    %p34 = scmp.ne.s32.totalorder %s23, %s24
    %p35 = scmp.eq.s32.totalorder %s15, 0
    %p36 = por %p34, %p35
    %p37 = scmp.ne.s32.totalorder %s23, %s24
    %p38 = scmp.eq.s32.totalorder %s16, 1
    %p39 = por %p37, %p38
    %p41 = scmp.ne.s32.totalorder %s24, %s40
    %p42 = scmp.eq.s32.totalorder %s16, 0
    %p43 = por %p41, %p42
    %s44 = ssub.s32 %s10, %s17
    %p45 = scmp.eq.s32.totalorder %s44, 0
    %s47 = sadd.s32 %s46, 1
    %s48 = scalar_select %p45, %s46, %s47
    %p51 = pneg %p45
    %p52 = scmp.eq.s32.totalorder %s10, 1
    %p53 = por %p51, %p52
    %p54 = scmp.ne.s32.totalorder %s46, %s49
    %p55 = scmp.eq.s32.totalorder %s10, 0
    %p56 = por %p54, %p55
    %p57 = scmp.ne.s32.totalorder %s46, %s49
    %p58 = scmp.eq.s32.totalorder %s15, 1
    %p59 = por %p57, %p58
    %p60 = scmp.ne.s32.totalorder %s49, %s50
    %p61 = scmp.eq.s32.totalorder %s15, 0
    %p62 = por %p60, %p61
    %p63 = scmp.ne.s32.totalorder %s49, %s50
    %p64 = scmp.eq.s32.totalorder %s16, 1
    %p65 = por %p63, %p64
    %p67 = scmp.ne.s32.totalorder %s50, %s66
    %p68 = scmp.eq.s32.totalorder %s16, 0
    %p69 = por %p67, %p68
    %s71 = sadd.s32 %s70, 1
    %p74 = scmp.eq.s32.totalorder %s10, 1
    %p75 = scmp.ne.s32.totalorder %s70, %s72
    %p76 = scmp.eq.s32.totalorder %s10, 0
    %p77 = por %p75, %p76
    %p78 = scmp.ne.s32.totalorder %s70, %s72
    %p79 = scmp.eq.s32.totalorder %s15, 1
    %p80 = por %p78, %p79
    %p81 = scmp.ne.s32.totalorder %s72, %s73
    %p82 = scmp.eq.s32.totalorder %s15, 0
    %p83 = por %p81, %p82
    %p84 = scmp.ne.s32.totalorder %s72, %s73
    %p85 = scmp.eq.s32.totalorder %s16, 1
    %p86 = por %p84, %p85
    %p88 = scmp.ne.s32.totalorder %s73, %s87
    %p89 = scmp.eq.s32.totalorder %s16, 0
    %p90 = por %p88, %p89
    %s92 = sadd.s32 %s91, 1
    %p95 = scmp.eq.s32.totalorder %s10, 1
    %p96 = scmp.ne.s32.totalorder %s91, %s93
    %p97 = scmp.eq.s32.totalorder %s10, 0
    %p98 = por %p96, %p97
    %p99 = scmp.ne.s32.totalorder %s91, %s93
    %p100 = scmp.eq.s32.totalorder %s15, 1
    %p101 = por %p99, %p100
    %p102 = scmp.ne.s32.totalorder %s93, %s94
    %p103 = scmp.eq.s32.totalorder %s15, 0
    %p104 = por %p102, %p103
    %p105 = scmp.ne.s32.totalorder %s93, %s94
    %p106 = scmp.eq.s32.totalorder %s16, 1
    %p107 = por %p105, %p106
    %p109 = scmp.ne.s32.totalorder %s94, %s108
    %p110 = scmp.eq.s32.totalorder %s16, 0
    %p111 = por %p109, %p110
    %s112 = ssub.s32 %s10, %s17
    %p113 = scmp.eq.s32.totalorder %s112, 0
    %s115 = sadd.s32 %s114, 1
    %s116 = scalar_select %p113, %s114, %s115
    %p119 = pneg %p113
    %p120 = scmp.eq.s32.totalorder %s10, 1
    %p121 = por %p119, %p120
    %p122 = scmp.ne.s32.totalorder %s114, %s117
    %p123 = scmp.eq.s32.totalorder %s10, 0
    %p124 = por %p122, %p123
    %p125 = scmp.ne.s32.totalorder %s114, %s117
    %p126 = scmp.eq.s32.totalorder %s15, 1
    %p127 = por %p125, %p126
    %p128 = scmp.ne.s32.totalorder %s117, %s118
    %p129 = scmp.eq.s32.totalorder %s15, 0
    %p130 = por %p128, %p129
    %p131 = scmp.ne.s32.totalorder %s117, %s118
    %p132 = scmp.eq.s32.totalorder %s16, 1
    %p133 = por %p131, %p132
    %p135 = scmp.ne.s32.totalorder %s118, %s134
    %p136 = scmp.eq.s32.totalorder %s16, 0
    %p137 = por %p135, %p136
    %p138 = scmp.le.s32.totalorder 1, %s10
    %p139 = scmp.lt.s32.totalorder %s10, 3
    %p140 = pnand %p138, %p139
    %p141 = pneg %p140
    // Predicated region
    $region9: #{mask_mlp_attention.1} parent=5 // pred_check
      _
    $region10: #{mask_mlp_attention.1} parent=5 // pred_check_branch
      %143 = sbr.rel (%p140) target = $region12
    $region11: #{mask_mlp_attention.1} parent=5 // pred_region
      %s144 = ssub.s32 %s10, 1
      // Predicated region
      $region13: #{mask_mlp_attention.1} parent=11 // pred_check
        %p145 = pneg %p83
      $region14: #{mask_mlp_attention.1} parent=11 // pred_check_branch
        %147 = sbr.rel (%p145) target = $region16
      $region15: #{mask_mlp_attention.1} parent=11 // pred_region
        _
      $region16: #{mask_mlp_attention.1} parent=11 // pred_fallthru
        _
      // Predicated region
      $region17: #{mask_mlp_attention.1} parent=11 // pred_check
        %p148 = pneg %p104
      $region18: #{mask_mlp_attention.1} parent=11 // pred_check_branch
        %150 = sbr.rel (%p148) target = $region20
      $region19: #{mask_mlp_attention.1} parent=11 // pred_region
        _
      $region20: #{mask_mlp_attention.1} parent=11 // pred_fallthru
        _
    $region12: #{mask_mlp_attention.1} parent=5 // pred_fallthru
      _
    %p151 = scmp.lt.s32.totalorder %s10, 2
    // Predicated region
    $region21: #{mask_mlp_attention.1} parent=5 // pred_check
      %p152 = pneg %p151
    $region22: #{mask_mlp_attention.1} parent=5 // pred_check_branch
      %154 = sbr.rel (%p152) target = $region24
    $region23: #{mask_mlp_attention.1} parent=5 // pred_region
      // Predicated region
      $region25: #{mask_mlp_attention.1} parent=23 // pred_check
        %p155 = pneg %p30
      $region26: #{mask_mlp_attention.1} parent=23 // pred_check_branch
        %157 = sbr.rel (%p155) target = $region28
      $region27: #{mask_mlp_attention.1} parent=23 // pred_region
        %s158 = smul.u32 8, %s10
        %p159 = scmp.lt.s32.totalorder %s158, 15
        %s160 = scalar_select %p159, %s158, 15
        %s161 = smul.addr %s160, 2
        %s162 = smul.addr %s161, 8
        %s163 = scalar_lea.vmem %s0, %s162
        %s164 = smul.u32 8, %s10
      $region28: #{mask_mlp_attention.1} parent=23 // pred_fallthru
        _
      // Predicated region
      $region29: #{mask_mlp_attention.1} parent=23 // pred_check
        %p165 = pneg %p56
      $region30: #{mask_mlp_attention.1} parent=23 // pred_check_branch
        %167 = sbr.rel (%p165) target = $region32
      $region31: #{mask_mlp_attention.1} parent=23 // pred_region
        %s168 = smul.u32 8, %s10
        %p169 = scmp.lt.s32.totalorder %s168, 15
        %s170 = scalar_select %p169, %s168, 15
        %s171 = smul.addr %s170, 8
        %s172 = scalar_lea.vmem %s1, %s171
        %s173 = smul.u32 8, %s10
      $region32: #{mask_mlp_attention.1} parent=23 // pred_fallthru
        _
    $region24: #{mask_mlp_attention.1} parent=5 // pred_fallthru
      _
    %p174 = scmp.le.s32.totalorder 1, %s10
    %p175 = scmp.lt.s32.totalorder %s10, 3
    %p176 = pnand %p174, %p175
    %p177 = pneg %p176
    // Predicated region
    $region33: #{mask_mlp_attention.1} parent=5 // pred_check
      _
    $region34: #{mask_mlp_attention.1} parent=5 // pred_check_branch
      %179 = sbr.rel (%p176) target = $region36
    $region35: #{mask_mlp_attention.1} parent=5 // pred_region
      %s180 = ssub.s32 %s10, 1
      %s181 = smul.u32 8, %s15
      %p182 = scmp.lt.s32.totalorder %s181, 15
      %s183 = scalar_select %p182, %s181, 15
      %s184 = smul.addr %s183, 2
      %s185 = smul.addr %s184, 8
      %s186 = scalar_lea.vmem %s0, %s185
      %p187 = pneg %p36
      %p188 = pneg %p33
      %s189 = smul.u32 8, %s15
      %p190 = scmp.lt.s32.totalorder %s189, 15
      %s191 = scalar_select %p190, %s189, 15
      %s192 = smul.addr %s191, 8
      %s193 = scalar_lea.vmem %s1, %s192
      %p194 = pneg %p62
      %p195 = pneg %p59
      %p196 = pneg %p83
      %p197 = pneg %p80
      %p198 = pneg %p104
      %p199 = pneg %p101
      %p200 = pneg %p130
      %p201 = pneg %p127
      %s202 = smul.u32 8, %s15
      %p203 = scmp.lt.s32.totalorder %s202, 15
      %s204 = scalar_select %p203, %s202, 15
      %s205 = smul.addr %s204, 8
      %s206 = scalar_lea.vmem %s4, %s205
      %s207 = smul.u32 8, %s15
      %p208 = scmp.lt.s32.totalorder %s207, 15
      %s209 = scalar_select %p208, %s207, 15
      %s210 = smul.addr %s209, 2
      %s211 = smul.addr %s210, 8
      %s212 = scalar_lea.vmem %s0, %s211
      %s213 = smul.u32 8, %s15
      %s214 = smul.u32 8, %s15
      %p215 = scmp.lt.s32.totalorder %s214, 15
      %s216 = scalar_select %p215, %s214, 15
      %s217 = smul.addr %s216, 8
      %s218 = scalar_lea.vmem %s1, %s217
      %s219 = smul.u32 8, %s15
      %s220 = smul.u32 8, %s15
      %p221 = scmp.lt.s32.totalorder %s220, 15
      %s222 = scalar_select %p221, %s220, 15
      %s223 = smul.addr %s222, 8
      %s224 = scalar_lea.vmem %s4, %s223
      %s225 = smul.u32 8, %s15
      %v226 = vld [vmem:[%s2] sm:$0xff]
      %v227 = vld [vmem:[%s2 + $0x8] sm:$0xff]
      %v228 = vld [vmem:[%s2 + $0x10] sm:$0xff]
      %v229 = vld [vmem:[%s2 + $0x18] sm:$0xff]
      %v230 = vld [vmem:[%s3] sm:$0x1]
      %v231 = vld [vmem:[%s218] sm:$0xff]
      %v232 = vld [vmem:[%s218 + $0x8] sm:$0xff]
      %v233 = vld [vmem:[%s218 + $0x10] sm:$0xff]
      %v234 = vld [vmem:[%s218 + $0x18] sm:$0xff]
      %v235 = vld [vmem:[%s218 + $0x20] sm:$0xff]
      %v236 = vld [vmem:[%s218 + $0x28] sm:$0xff]
      %v237 = vld [vmem:[%s218 + $0x30] sm:$0xff]
      %v238 = vld [vmem:[%s218 + $0x38] sm:$0xff]
      %v239 = vlaneseq
      %v240 = vand.u32 %v239, 127
      %v241 = vld [vmem:[%s212] sm:$0xff]
      %v242 = vld [vmem:[%s212 + $0x10] sm:$0xff]
      %v243 = vld [vmem:[%s212 + $0x20] sm:$0xff]
      %v244 = vld [vmem:[%s212 + $0x30] sm:$0xff]
      %v245 = vld [vmem:[%s212 + $0x40] sm:$0xff]
      %v246 = vld [vmem:[%s212 + $0x50] sm:$0xff]
      %v247 = vld [vmem:[%s212 + $0x60] sm:$0xff]
      %v248 = vld [vmem:[%s212 + $0x70] sm:$0xff]
      %vm249 = vcmask 261120
      %v251 = vsel %vm249, %v241, 0
      %v254 = vsel %vm249, %v242, 0
      %v257 = vsel %vm249, %v243, 0
      %v260 = vsel %vm249, %v244, 0
      %v263 = vsel %vm249, %v245, 0
      %v266 = vsel %vm249, %v246, 0
      %v269 = vsel %vm249, %v247, 0
      %v272 = vsel %vm249, %v248, 0
      %274 = vmatpush.msra.mxu0 0.0
      %275 = vmatpush.msra.mxu0 0.0
      %276 = vmatpush.msra.mxu0 0.0
      %277 = vmatpush.msra.mxu0 0.0
      %278 = vmatpush.msra.mxu0 0.0
      %279 = vmatpush.msra.mxu0 0.0
      %280 = vmatpush.msra.mxu0 0.0
      %281 = vmatpush.msra.mxu0 0.0
      %282 = vmatpush.msra.mxu0 0.0
      %283 = vmatpush.msra.mxu0 0.0
      %284 = vmatpush.msra.mxu0 0.0
      %285 = vmatpush.msra.mxu0 0.0
      %286 = vmatpush.msra.mxu0 %v229
      %287 = vmatpush.msra.mxu0 %v228
      %288 = vmatpush.msra.mxu0 %v227
      %289 = vmatpush.msra.mxu0 %v226
      %290 = vmatmul.f32.gmra.mxu0 %v251
      %v291 = vpop.f32.mrf.mxu0
      %v292 = vadd.f32 0.0, %v291
      %293 = vmatmul.f32.gmra.mxu0 %v254
      %v294 = vpop.f32.mrf.mxu0
      %v295 = vadd.f32 0.0, %v294
      %296 = vmatmul.f32.gmra.mxu0 %v257
      %v297 = vpop.f32.mrf.mxu0
      %v298 = vadd.f32 0.0, %v297
      %299 = vmatmul.f32.gmra.mxu0 %v260
      %v300 = vpop.f32.mrf.mxu0
      %v301 = vadd.f32 0.0, %v300
      %302 = vmatmul.f32.gmra.mxu0 %v263
      %v303 = vpop.f32.mrf.mxu0
      %v304 = vadd.f32 0.0, %v303
      %305 = vmatmul.f32.gmra.mxu0 %v266
      %v306 = vpop.f32.mrf.mxu0
      %v307 = vadd.f32 0.0, %v306
      %308 = vmatmul.f32.gmra.mxu0 %v269
      %v309 = vpop.f32.mrf.mxu0
      %v310 = vadd.f32 0.0, %v309
      %311 = vmatmul.f32.gmra.mxu0 %v272
      %v312 = vpop.f32.mrf.mxu0
      %v313 = vadd.f32 0.0, %v312
      %314 = vdwg.mxu0
      %v315 = vtanh.pop %v292
      %v316 = vtanh.pop %v295
      %v317 = vtanh.pop %v298
      %v318 = vtanh.pop %v301
      %v319 = vtanh.pop %v304
      %v320 = vtanh.pop %v307
      %v321 = vtanh.pop %v310
      %v322 = vtanh.pop %v313
      %v324 = vperm.slane %v230, 0
      %v326 = vmul.f32 %v315, %v324
      %v327 = vmul.f32 %v316, %v324
      %v328 = vmul.f32 %v317, %v324
      %v329 = vmul.f32 %v318, %v324
      %v330 = vmul.f32 %v319, %v324
      %v331 = vmul.f32 %v320, %v324
      %v332 = vmul.f32 %v321, %v324
      %v333 = vmul.f32 %v322, %v324
      %vm334 = vcmask 523264
      %v335 = vsel %vm334, %v326, 0.0
      %336 = vadd.xlane.f32.xlu0 %v335
      %v337 = vpop.xlane.xlu0 %336
      %v338 = vsel %vm334, %v327, 0.0
      %339 = vadd.xlane.f32.xlu0 %v338
      %v340 = vpop.xlane.xlu0 %339
      %v341 = vsel %vm334, %v328, 0.0
      %342 = vadd.xlane.f32.xlu0 %v341
      %v343 = vpop.xlane.xlu0 %342
      %v344 = vsel %vm334, %v329, 0.0
      %345 = vadd.xlane.f32.xlu0 %v344
      %v346 = vpop.xlane.xlu0 %345
      %v347 = vsel %vm334, %v330, 0.0
      %348 = vadd.xlane.f32.xlu0 %v347
      %v349 = vpop.xlane.xlu0 %348
      %v350 = vsel %vm334, %v331, 0.0
      %351 = vadd.xlane.f32.xlu0 %v350
      %v352 = vpop.xlane.xlu0 %351
      %v353 = vsel %vm334, %v332, 0.0
      %354 = vadd.xlane.f32.xlu0 %v353
      %v355 = vpop.xlane.xlu0 %354
      %v356 = vsel %vm334, %v333, 0.0
      %357 = vadd.xlane.f32.xlu0 %v356
      %v358 = vpop.xlane.xlu0 %357
      %vm359 = vcmp.eq.s32.totalorder %v240, 0
      %v360 = vsel %vm359, 1, 0
      %vm361 = vcmp.eq.s32.totalorder %v360, 1
      %v362 = vsel %vm361, %v337, 0.0
      %v363 = vsel %vm361, %v340, 0.0
      %v364 = vsel %vm361, %v343, 0.0
      %v365 = vsel %vm361, %v346, 0.0
      %v366 = vsel %vm361, %v349, 0.0
      %v367 = vsel %vm361, %v352, 0.0
      %v368 = vsel %vm361, %v355, 0.0
      %v369 = vsel %vm361, %v358, 0.0
      %v370 = vadd.f32 %v362, 0.0
      %v371 = vadd.f32 %v363, 0.0
      %v372 = vadd.f32 %v364, 0.0
      %v373 = vadd.f32 %v365, 0.0
      %v374 = vadd.f32 %v366, 0.0
      %v375 = vadd.f32 %v367, 0.0
      %v376 = vadd.f32 %v368, 0.0
      %v377 = vadd.f32 %v369, 0.0
      %378 = vrot.lane.b32.xlu0 %v241, 96
      %v379 = vpop.permute.xlu0 %378
      %380 = vrot.lane.b32.xlu0 %v242, 96
      %v381 = vpop.permute.xlu0 %380
      %382 = vrot.lane.b32.xlu0 %v243, 96
      %v383 = vpop.permute.xlu0 %382
      %384 = vrot.lane.b32.xlu0 %v244, 96
      %v385 = vpop.permute.xlu0 %384
      %386 = vrot.lane.b32.xlu0 %v245, 96
      %v387 = vpop.permute.xlu0 %386
      %388 = vrot.lane.b32.xlu0 %v246, 96
      %v389 = vpop.permute.xlu0 %388
      %390 = vrot.lane.b32.xlu0 %v247, 96
      %v391 = vpop.permute.xlu0 %390
      %392 = vrot.lane.b32.xlu0 %v248, 96
      %v393 = vpop.permute.xlu0 %392
      %v394 = vsel %vm249, %v379, 0
      %v396 = vsel %vm249, %v381, 0
      %v398 = vsel %vm249, %v383, 0
      %v400 = vsel %vm249, %v385, 0
      %v402 = vsel %vm249, %v387, 0
      %v404 = vsel %vm249, %v389, 0
      %v406 = vsel %vm249, %v391, 0
      %v408 = vsel %vm249, %v393, 0
      %410 = vmatpush.msra.mxu0 0.0
      %411 = vmatpush.msra.mxu0 0.0
      %412 = vmatpush.msra.mxu0 0.0
      %413 = vmatpush.msra.mxu0 0.0
      %414 = vmatpush.msra.mxu0 0.0
      %415 = vmatpush.msra.mxu0 0.0
      %416 = vmatpush.msra.mxu0 0.0
      %417 = vmatpush.msra.mxu0 0.0
      %418 = vmatpush.msra.mxu0 0.0
      %419 = vmatpush.msra.mxu0 0.0
      %420 = vmatpush.msra.mxu0 0.0
      %421 = vmatpush.msra.mxu0 0.0
      %422 = vmatpush.msra.mxu0 %v229
      %423 = vmatpush.msra.mxu0 %v228
      %424 = vmatpush.msra.mxu0 %v227
      %425 = vmatpush.msra.mxu0 %v226
      %426 = vmatmul.f32.gmra.mxu0 %v394
      %v427 = vpop.f32.mrf.mxu0
      %v428 = vadd.f32 0.0, %v427
      %429 = vmatmul.f32.gmra.mxu0 %v396
      %v430 = vpop.f32.mrf.mxu0
      %v431 = vadd.f32 0.0, %v430
      %432 = vmatmul.f32.gmra.mxu0 %v398
      %v433 = vpop.f32.mrf.mxu0
      %v434 = vadd.f32 0.0, %v433
      %435 = vmatmul.f32.gmra.mxu0 %v400
      %v436 = vpop.f32.mrf.mxu0
      %v437 = vadd.f32 0.0, %v436
      %438 = vmatmul.f32.gmra.mxu0 %v402
      %v439 = vpop.f32.mrf.mxu0
      %v440 = vadd.f32 0.0, %v439
      %441 = vmatmul.f32.gmra.mxu0 %v404
      %v442 = vpop.f32.mrf.mxu0
      %v443 = vadd.f32 0.0, %v442
      %444 = vmatmul.f32.gmra.mxu0 %v406
      %v445 = vpop.f32.mrf.mxu0
      %v446 = vadd.f32 0.0, %v445
      %447 = vmatmul.f32.gmra.mxu0 %v408
      %v448 = vpop.f32.mrf.mxu0
      %v449 = vadd.f32 0.0, %v448
      %450 = vdwg.mxu0
      %v451 = vtanh.pop %v428
      %v452 = vtanh.pop %v431
      %v453 = vtanh.pop %v434
      %v454 = vtanh.pop %v437
      %v455 = vtanh.pop %v440
      %v456 = vtanh.pop %v443
      %v457 = vtanh.pop %v446
      %v458 = vtanh.pop %v449
      %v459 = vmul.f32 %v451, %v324
      %v460 = vmul.f32 %v452, %v324
      %v461 = vmul.f32 %v453, %v324
      %v462 = vmul.f32 %v454, %v324
      %v463 = vmul.f32 %v455, %v324
      %v464 = vmul.f32 %v456, %v324
      %v465 = vmul.f32 %v457, %v324
      %v466 = vmul.f32 %v458, %v324
      %v467 = vsel %vm334, %v459, 0.0
      %468 = vadd.xlane.f32.xlu0 %v467
      %v469 = vpop.xlane.xlu0 %468
      %v470 = vsel %vm334, %v460, 0.0
      %471 = vadd.xlane.f32.xlu0 %v470
      %v472 = vpop.xlane.xlu0 %471
      %v473 = vsel %vm334, %v461, 0.0
      %474 = vadd.xlane.f32.xlu0 %v473
      %v475 = vpop.xlane.xlu0 %474
      %v476 = vsel %vm334, %v462, 0.0
      %477 = vadd.xlane.f32.xlu0 %v476
      %v478 = vpop.xlane.xlu0 %477
      %v479 = vsel %vm334, %v463, 0.0
      %480 = vadd.xlane.f32.xlu0 %v479
      %v481 = vpop.xlane.xlu0 %480
      %v482 = vsel %vm334, %v464, 0.0
      %483 = vadd.xlane.f32.xlu0 %v482
      %v484 = vpop.xlane.xlu0 %483
      %v485 = vsel %vm334, %v465, 0.0
      %486 = vadd.xlane.f32.xlu0 %v485
      %v487 = vpop.xlane.xlu0 %486
      %v488 = vsel %vm334, %v466, 0.0
      %489 = vadd.xlane.f32.xlu0 %v488
      %v490 = vpop.xlane.xlu0 %489
      %vm491 = vcmp.eq.s32.totalorder %v240, 1
      %v492 = vsel %vm491, 1, 0
      %vm493 = vcmp.eq.s32.totalorder %v492, 1
      %v494 = vsel %vm493, %v469, 0.0
      %v495 = vsel %vm493, %v472, 0.0
      %v496 = vsel %vm493, %v475, 0.0
      %v497 = vsel %vm493, %v478, 0.0
      %v498 = vsel %vm493, %v481, 0.0
      %v499 = vsel %vm493, %v484, 0.0
      %v500 = vsel %vm493, %v487, 0.0
      %v501 = vsel %vm493, %v490, 0.0
      %v502 = vadd.f32 %v370, %v494
      %v503 = vadd.f32 %v371, %v495
      %v504 = vadd.f32 %v372, %v496
      %v505 = vadd.f32 %v373, %v497
      %v506 = vadd.f32 %v374, %v498
      %v507 = vadd.f32 %v375, %v499
      %v508 = vadd.f32 %v376, %v500
      %v509 = vadd.f32 %v377, %v501
      %510 = vrot.lane.b32.xlu0 %v241, 64
      %v511 = vpop.permute.xlu0 %510
      %512 = vrot.lane.b32.xlu0 %v242, 64
      %v513 = vpop.permute.xlu0 %512
      %514 = vrot.lane.b32.xlu0 %v243, 64
      %v515 = vpop.permute.xlu0 %514
      %516 = vrot.lane.b32.xlu0 %v244, 64
      %v517 = vpop.permute.xlu0 %516
      %518 = vrot.lane.b32.xlu0 %v245, 64
      %v519 = vpop.permute.xlu0 %518
      %520 = vrot.lane.b32.xlu0 %v246, 64
      %v521 = vpop.permute.xlu0 %520
      %522 = vrot.lane.b32.xlu0 %v247, 64
      %v523 = vpop.permute.xlu0 %522
      %524 = vrot.lane.b32.xlu0 %v248, 64
      %v525 = vpop.permute.xlu0 %524
      %v526 = vsel %vm249, %v511, 0
      %v528 = vsel %vm249, %v513, 0
      %v530 = vsel %vm249, %v515, 0
      %v532 = vsel %vm249, %v517, 0
      %v534 = vsel %vm249, %v519, 0
      %v536 = vsel %vm249, %v521, 0
      %v538 = vsel %vm249, %v523, 0
      %v540 = vsel %vm249, %v525, 0
      %542 = vmatpush.msra.mxu0 0.0
      %543 = vmatpush.msra.mxu0 0.0
      %544 = vmatpush.msra.mxu0 0.0
      %545 = vmatpush.msra.mxu0 0.0
      %546 = vmatpush.msra.mxu0 0.0
      %547 = vmatpush.msra.mxu0 0.0
      %548 = vmatpush.msra.mxu0 0.0
      %549 = vmatpush.msra.mxu0 0.0
      %550 = vmatpush.msra.mxu0 0.0
      %551 = vmatpush.msra.mxu0 0.0
      %552 = vmatpush.msra.mxu0 0.0
      %553 = vmatpush.msra.mxu0 0.0
      %554 = vmatpush.msra.mxu0 %v229
      %555 = vmatpush.msra.mxu0 %v228
      %556 = vmatpush.msra.mxu0 %v227
      %557 = vmatpush.msra.mxu0 %v226
      %558 = vmatmul.f32.gmra.mxu0 %v526
      %v559 = vpop.f32.mrf.mxu0
      %v560 = vadd.f32 0.0, %v559
      %561 = vmatmul.f32.gmra.mxu0 %v528
      %v562 = vpop.f32.mrf.mxu0
      %v563 = vadd.f32 0.0, %v562
      %564 = vmatmul.f32.gmra.mxu0 %v530
      %v565 = vpop.f32.mrf.mxu0
      %v566 = vadd.f32 0.0, %v565
      %567 = vmatmul.f32.gmra.mxu0 %v532
      %v568 = vpop.f32.mrf.mxu0
      %v569 = vadd.f32 0.0, %v568
      %570 = vmatmul.f32.gmra.mxu0 %v534
      %v571 = vpop.f32.mrf.mxu0
      %v572 = vadd.f32 0.0, %v571
      %573 = vmatmul.f32.gmra.mxu0 %v536
      %v574 = vpop.f32.mrf.mxu0
      %v575 = vadd.f32 0.0, %v574
      %576 = vmatmul.f32.gmra.mxu0 %v538
      %v577 = vpop.f32.mrf.mxu0
      %v578 = vadd.f32 0.0, %v577
      %579 = vmatmul.f32.gmra.mxu0 %v540
      %v580 = vpop.f32.mrf.mxu0
      %v581 = vadd.f32 0.0, %v580
      %582 = vdwg.mxu0
      %v583 = vtanh.pop %v560
      %v584 = vtanh.pop %v563
      %v585 = vtanh.pop %v566
      %v586 = vtanh.pop %v569
      %v587 = vtanh.pop %v572
      %v588 = vtanh.pop %v575
      %v589 = vtanh.pop %v578
      %v590 = vtanh.pop %v581
      %v591 = vmul.f32 %v583, %v324
      %v592 = vmul.f32 %v584, %v324
      %v593 = vmul.f32 %v585, %v324
      %v594 = vmul.f32 %v586, %v324
      %v595 = vmul.f32 %v587, %v324
      %v596 = vmul.f32 %v588, %v324
      %v597 = vmul.f32 %v589, %v324
      %v598 = vmul.f32 %v590, %v324
      %v599 = vsel %vm334, %v591, 0.0
      %600 = vadd.xlane.f32.xlu0 %v599
      %v601 = vpop.xlane.xlu0 %600
      %v602 = vsel %vm334, %v592, 0.0
      %603 = vadd.xlane.f32.xlu0 %v602
      %v604 = vpop.xlane.xlu0 %603
      %v605 = vsel %vm334, %v593, 0.0
      %606 = vadd.xlane.f32.xlu0 %v605
      %v607 = vpop.xlane.xlu0 %606
      %v608 = vsel %vm334, %v594, 0.0
      %609 = vadd.xlane.f32.xlu0 %v608
      %v610 = vpop.xlane.xlu0 %609
      %v611 = vsel %vm334, %v595, 0.0
      %612 = vadd.xlane.f32.xlu0 %v611
      %v613 = vpop.xlane.xlu0 %612
      %v614 = vsel %vm334, %v596, 0.0
      %615 = vadd.xlane.f32.xlu0 %v614
      %v616 = vpop.xlane.xlu0 %615
      %v617 = vsel %vm334, %v597, 0.0
      %618 = vadd.xlane.f32.xlu0 %v617
      %v619 = vpop.xlane.xlu0 %618
      %v620 = vsel %vm334, %v598, 0.0
      %621 = vadd.xlane.f32.xlu0 %v620
      %v622 = vpop.xlane.xlu0 %621
      %vm623 = vcmp.eq.s32.totalorder %v240, 2
      %v624 = vsel %vm623, 1, 0
      %vm625 = vcmp.eq.s32.totalorder %v624, 1
      %v626 = vsel %vm625, %v601, 0.0
      %v627 = vsel %vm625, %v604, 0.0
      %v628 = vsel %vm625, %v607, 0.0
      %v629 = vsel %vm625, %v610, 0.0
      %v630 = vsel %vm625, %v613, 0.0
      %v631 = vsel %vm625, %v616, 0.0
      %v632 = vsel %vm625, %v619, 0.0
      %v633 = vsel %vm625, %v622, 0.0
      %v634 = vadd.f32 %v502, %v626
      %v635 = vadd.f32 %v503, %v627
      %v636 = vadd.f32 %v504, %v628
      %v637 = vadd.f32 %v505, %v629
      %v638 = vadd.f32 %v506, %v630
      %v639 = vadd.f32 %v507, %v631
      %v640 = vadd.f32 %v508, %v632
      %v641 = vadd.f32 %v509, %v633
      %642 = vrot.lane.b32.xlu0 %v241, 32
      %v643 = vpop.permute.xlu0 %642
      %644 = vrot.lane.b32.xlu0 %v242, 32
      %v645 = vpop.permute.xlu0 %644
      %646 = vrot.lane.b32.xlu0 %v243, 32
      %v647 = vpop.permute.xlu0 %646
      %648 = vrot.lane.b32.xlu0 %v244, 32
      %v649 = vpop.permute.xlu0 %648
      %650 = vrot.lane.b32.xlu0 %v245, 32
      %v651 = vpop.permute.xlu0 %650
      %652 = vrot.lane.b32.xlu0 %v246, 32
      %v653 = vpop.permute.xlu0 %652
      %654 = vrot.lane.b32.xlu0 %v247, 32
      %v655 = vpop.permute.xlu0 %654
      %656 = vrot.lane.b32.xlu0 %v248, 32
      %v657 = vpop.permute.xlu0 %656
      %v658 = vsel %vm249, %v643, 0
      %v660 = vsel %vm249, %v645, 0
      %v662 = vsel %vm249, %v647, 0
      %v664 = vsel %vm249, %v649, 0
      %v666 = vsel %vm249, %v651, 0
      %v668 = vsel %vm249, %v653, 0
      %v670 = vsel %vm249, %v655, 0
      %v672 = vsel %vm249, %v657, 0
      %674 = vmatpush.msra.mxu0 0.0
      %675 = vmatpush.msra.mxu0 0.0
      %676 = vmatpush.msra.mxu0 0.0
      %677 = vmatpush.msra.mxu0 0.0
      %678 = vmatpush.msra.mxu0 0.0
      %679 = vmatpush.msra.mxu0 0.0
      %680 = vmatpush.msra.mxu0 0.0
      %681 = vmatpush.msra.mxu0 0.0
      %682 = vmatpush.msra.mxu0 0.0
      %683 = vmatpush.msra.mxu0 0.0
      %684 = vmatpush.msra.mxu0 0.0
      %685 = vmatpush.msra.mxu0 0.0
      %686 = vmatpush.msra.mxu0 %v229
      %687 = vmatpush.msra.mxu0 %v228
      %688 = vmatpush.msra.mxu0 %v227
      %689 = vmatpush.msra.mxu0 %v226
      %690 = vmatmul.f32.gmra.mxu0 %v658
      %v691 = vpop.f32.mrf.mxu0
      %v692 = vadd.f32 0.0, %v691
      %693 = vmatmul.f32.gmra.mxu0 %v660
      %v694 = vpop.f32.mrf.mxu0
      %v695 = vadd.f32 0.0, %v694
      %696 = vmatmul.f32.gmra.mxu0 %v662
      %v697 = vpop.f32.mrf.mxu0
      %v698 = vadd.f32 0.0, %v697
      %699 = vmatmul.f32.gmra.mxu0 %v664
      %v700 = vpop.f32.mrf.mxu0
      %v701 = vadd.f32 0.0, %v700
      %702 = vmatmul.f32.gmra.mxu0 %v666
      %v703 = vpop.f32.mrf.mxu0
      %v704 = vadd.f32 0.0, %v703
      %705 = vmatmul.f32.gmra.mxu0 %v668
      %v706 = vpop.f32.mrf.mxu0
      %v707 = vadd.f32 0.0, %v706
      %708 = vmatmul.f32.gmra.mxu0 %v670
      %v709 = vpop.f32.mrf.mxu0
      %v710 = vadd.f32 0.0, %v709
      %711 = vmatmul.f32.gmra.mxu0 %v672
      %v712 = vpop.f32.mrf.mxu0
      %v713 = vadd.f32 0.0, %v712
      %714 = vdwg.mxu0
      %v715 = vtanh.pop %v692
      %v716 = vtanh.pop %v695
      %v717 = vtanh.pop %v698
      %v718 = vtanh.pop %v701
      %v719 = vtanh.pop %v704
      %v720 = vtanh.pop %v707
      %v721 = vtanh.pop %v710
      %v722 = vtanh.pop %v713
      %v723 = vmul.f32 %v715, %v324
      %v724 = vmul.f32 %v716, %v324
      %v725 = vmul.f32 %v717, %v324
      %v726 = vmul.f32 %v718, %v324
      %v727 = vmul.f32 %v719, %v324
      %v728 = vmul.f32 %v720, %v324
      %v729 = vmul.f32 %v721, %v324
      %v730 = vmul.f32 %v722, %v324
      %v731 = vsel %vm334, %v723, 0.0
      %732 = vadd.xlane.f32.xlu0 %v731
      %v733 = vpop.xlane.xlu0 %732
      %v734 = vsel %vm334, %v724, 0.0
      %735 = vadd.xlane.f32.xlu0 %v734
      %v736 = vpop.xlane.xlu0 %735
      %v737 = vsel %vm334, %v725, 0.0
      %738 = vadd.xlane.f32.xlu0 %v737
      %v739 = vpop.xlane.xlu0 %738
      %v740 = vsel %vm334, %v726, 0.0
      %741 = vadd.xlane.f32.xlu0 %v740
      %v742 = vpop.xlane.xlu0 %741
      %v743 = vsel %vm334, %v727, 0.0
      %744 = vadd.xlane.f32.xlu0 %v743
      %v745 = vpop.xlane.xlu0 %744
      %v746 = vsel %vm334, %v728, 0.0
      %747 = vadd.xlane.f32.xlu0 %v746
      %v748 = vpop.xlane.xlu0 %747
      %v749 = vsel %vm334, %v729, 0.0
      %750 = vadd.xlane.f32.xlu0 %v749
      %v751 = vpop.xlane.xlu0 %750
      %v752 = vsel %vm334, %v730, 0.0
      %753 = vadd.xlane.f32.xlu0 %v752
      %v754 = vpop.xlane.xlu0 %753
      %vm755 = vcmp.eq.s32.totalorder %v240, 3
      %v756 = vsel %vm755, 1, 0
      %vm757 = vcmp.eq.s32.totalorder %v756, 1
      %v758 = vsel %vm757, %v733, 0.0
      %v759 = vsel %vm757, %v736, 0.0
      %v760 = vsel %vm757, %v739, 0.0
      %v761 = vsel %vm757, %v742, 0.0
      %v762 = vsel %vm757, %v745, 0.0
      %v763 = vsel %vm757, %v748, 0.0
      %v764 = vsel %vm757, %v751, 0.0
      %v765 = vsel %vm757, %v754, 0.0
      %v766 = vadd.f32 %v634, %v758
      %v767 = vadd.f32 %v635, %v759
      %v768 = vadd.f32 %v636, %v760
      %v769 = vadd.f32 %v637, %v761
      %v770 = vadd.f32 %v638, %v762
      %v771 = vadd.f32 %v639, %v763
      %v772 = vadd.f32 %v640, %v764
      %v773 = vadd.f32 %v641, %v765
      %v774 = vld [vmem:[%s212 + $0x8] sm:$0xff]
      %v775 = vld [vmem:[%s212 + $0x18] sm:$0xff]
      %v776 = vld [vmem:[%s212 + $0x28] sm:$0xff]
      %v777 = vld [vmem:[%s212 + $0x38] sm:$0xff]
      %v778 = vld [vmem:[%s212 + $0x48] sm:$0xff]
      %v779 = vld [vmem:[%s212 + $0x58] sm:$0xff]
      %v780 = vld [vmem:[%s212 + $0x68] sm:$0xff]
      %v781 = vld [vmem:[%s212 + $0x78] sm:$0xff]
      %v783 = vsel %vm249, %v774, 0
      %v786 = vsel %vm249, %v775, 0
      %v789 = vsel %vm249, %v776, 0
      %v792 = vsel %vm249, %v777, 0
      %v795 = vsel %vm249, %v778, 0
      %v798 = vsel %vm249, %v779, 0
      %v801 = vsel %vm249, %v780, 0
      %v804 = vsel %vm249, %v781, 0
      %806 = vmatpush.msra.mxu0 0.0
      %807 = vmatpush.msra.mxu0 0.0
      %808 = vmatpush.msra.mxu0 0.0
      %809 = vmatpush.msra.mxu0 0.0
      %810 = vmatpush.msra.mxu0 0.0
      %811 = vmatpush.msra.mxu0 0.0
      %812 = vmatpush.msra.mxu0 0.0
      %813 = vmatpush.msra.mxu0 0.0
      %814 = vmatpush.msra.mxu0 0.0
      %815 = vmatpush.msra.mxu0 0.0
      %816 = vmatpush.msra.mxu0 0.0
      %817 = vmatpush.msra.mxu0 0.0
      %818 = vmatpush.msra.mxu0 %v229
      %819 = vmatpush.msra.mxu0 %v228
      %820 = vmatpush.msra.mxu0 %v227
      %821 = vmatpush.msra.mxu0 %v226
      %822 = vmatmul.f32.gmra.mxu0 %v783
      %v823 = vpop.f32.mrf.mxu0
      %v824 = vadd.f32 0.0, %v823
      %825 = vmatmul.f32.gmra.mxu0 %v786
      %v826 = vpop.f32.mrf.mxu0
      %v827 = vadd.f32 0.0, %v826
      %828 = vmatmul.f32.gmra.mxu0 %v789
      %v829 = vpop.f32.mrf.mxu0
      %v830 = vadd.f32 0.0, %v829
      %831 = vmatmul.f32.gmra.mxu0 %v792
      %v832 = vpop.f32.mrf.mxu0
      %v833 = vadd.f32 0.0, %v832
      %834 = vmatmul.f32.gmra.mxu0 %v795
      %v835 = vpop.f32.mrf.mxu0
      %v836 = vadd.f32 0.0, %v835
      %837 = vmatmul.f32.gmra.mxu0 %v798
      %v838 = vpop.f32.mrf.mxu0
      %v839 = vadd.f32 0.0, %v838
      %840 = vmatmul.f32.gmra.mxu0 %v801
      %v841 = vpop.f32.mrf.mxu0
      %v842 = vadd.f32 0.0, %v841
      %843 = vmatmul.f32.gmra.mxu0 %v804
      %v844 = vpop.f32.mrf.mxu0
      %v845 = vadd.f32 0.0, %v844
      %846 = vdwg.mxu0
      %v847 = vtanh.pop %v824
      %v848 = vtanh.pop %v827
      %v849 = vtanh.pop %v830
      %v850 = vtanh.pop %v833
      %v851 = vtanh.pop %v836
      %v852 = vtanh.pop %v839
      %v853 = vtanh.pop %v842
      %v854 = vtanh.pop %v845
      %v855 = vmul.f32 %v847, %v324
      %v856 = vmul.f32 %v848, %v324
      %v857 = vmul.f32 %v849, %v324
      %v858 = vmul.f32 %v850, %v324
      %v859 = vmul.f32 %v851, %v324
      %v860 = vmul.f32 %v852, %v324
      %v861 = vmul.f32 %v853, %v324
      %v862 = vmul.f32 %v854, %v324
      %v863 = vsel %vm334, %v855, 0.0
      %864 = vadd.xlane.f32.xlu0 %v863
      %v865 = vpop.xlane.xlu0 %864
      %v866 = vsel %vm334, %v856, 0.0
      %867 = vadd.xlane.f32.xlu0 %v866
      %v868 = vpop.xlane.xlu0 %867
      %v869 = vsel %vm334, %v857, 0.0
      %870 = vadd.xlane.f32.xlu0 %v869
      %v871 = vpop.xlane.xlu0 %870
      %v872 = vsel %vm334, %v858, 0.0
      %873 = vadd.xlane.f32.xlu0 %v872
      %v874 = vpop.xlane.xlu0 %873
      %v875 = vsel %vm334, %v859, 0.0
      %876 = vadd.xlane.f32.xlu0 %v875
      %v877 = vpop.xlane.xlu0 %876
      %v878 = vsel %vm334, %v860, 0.0
      %879 = vadd.xlane.f32.xlu0 %v878
      %v880 = vpop.xlane.xlu0 %879
      %v881 = vsel %vm334, %v861, 0.0
      %882 = vadd.xlane.f32.xlu0 %v881
      %v883 = vpop.xlane.xlu0 %882
      %v884 = vsel %vm334, %v862, 0.0
      %885 = vadd.xlane.f32.xlu0 %v884
      %v886 = vpop.xlane.xlu0 %885
      %vm887 = vcmp.eq.s32.totalorder %v240, 4
      %v888 = vsel %vm887, 1, 0
      %vm889 = vcmp.eq.s32.totalorder %v888, 1
      %v890 = vsel %vm889, %v865, 0.0
      %v891 = vsel %vm889, %v868, 0.0
      %v892 = vsel %vm889, %v871, 0.0
      %v893 = vsel %vm889, %v874, 0.0
      %v894 = vsel %vm889, %v877, 0.0
      %v895 = vsel %vm889, %v880, 0.0
      %v896 = vsel %vm889, %v883, 0.0
      %v897 = vsel %vm889, %v886, 0.0
      %v898 = vadd.f32 %v766, %v890
      %v899 = vadd.f32 %v767, %v891
      %v900 = vadd.f32 %v768, %v892
      %v901 = vadd.f32 %v769, %v893
      %v902 = vadd.f32 %v770, %v894
      %v903 = vadd.f32 %v771, %v895
      %v904 = vadd.f32 %v772, %v896
      %v905 = vadd.f32 %v773, %v897
      %906 = vrot.lane.b32.xlu0 %v774, 96
      %v907 = vpop.permute.xlu0 %906
      %908 = vrot.lane.b32.xlu0 %v775, 96
      %v909 = vpop.permute.xlu0 %908
      %910 = vrot.lane.b32.xlu0 %v776, 96
      %v911 = vpop.permute.xlu0 %910
      %912 = vrot.lane.b32.xlu0 %v777, 96
      %v913 = vpop.permute.xlu0 %912
      %914 = vrot.lane.b32.xlu0 %v778, 96
      %v915 = vpop.permute.xlu0 %914
      %916 = vrot.lane.b32.xlu0 %v779, 96
      %v917 = vpop.permute.xlu0 %916
      %918 = vrot.lane.b32.xlu0 %v780, 96
      %v919 = vpop.permute.xlu0 %918
      %920 = vrot.lane.b32.xlu0 %v781, 96
      %v921 = vpop.permute.xlu0 %920
      %v922 = vsel %vm249, %v907, 0
      %v924 = vsel %vm249, %v909, 0
      %v926 = vsel %vm249, %v911, 0
      %v928 = vsel %vm249, %v913, 0
      %v930 = vsel %vm249, %v915, 0
      %v932 = vsel %vm249, %v917, 0
      %v934 = vsel %vm249, %v919, 0
      %v936 = vsel %vm249, %v921, 0
      %938 = vmatpush.msra.mxu0 0.0
      %939 = vmatpush.msra.mxu0 0.0
      %940 = vmatpush.msra.mxu0 0.0
      %941 = vmatpush.msra.mxu0 0.0
      %942 = vmatpush.msra.mxu0 0.0
      %943 = vmatpush.msra.mxu0 0.0
      %944 = vmatpush.msra.mxu0 0.0
      %945 = vmatpush.msra.mxu0 0.0
      %946 = vmatpush.msra.mxu0 0.0
      %947 = vmatpush.msra.mxu0 0.0
      %948 = vmatpush.msra.mxu0 0.0
      %949 = vmatpush.msra.mxu0 0.0
      %950 = vmatpush.msra.mxu0 %v229
      %951 = vmatpush.msra.mxu0 %v228
      %952 = vmatpush.msra.mxu0 %v227
      %953 = vmatpush.msra.mxu0 %v226
      %954 = vmatmul.f32.gmra.mxu0 %v922
      %v955 = vpop.f32.mrf.mxu0
      %v956 = vadd.f32 0.0, %v955
      %957 = vmatmul.f32.gmra.mxu0 %v924
      %v958 = vpop.f32.mrf.mxu0
      %v959 = vadd.f32 0.0, %v958
      %960 = vmatmul.f32.gmra.mxu0 %v926
      %v961 = vpop.f32.mrf.mxu0
      %v962 = vadd.f32 0.0, %v961
      %963 = vmatmul.f32.gmra.mxu0 %v928
      %v964 = vpop.f32.mrf.mxu0
      %v965 = vadd.f32 0.0, %v964
      %966 = vmatmul.f32.gmra.mxu0 %v930
      %v967 = vpop.f32.mrf.mxu0
      %v968 = vadd.f32 0.0, %v967
      %969 = vmatmul.f32.gmra.mxu0 %v932
      %v970 = vpop.f32.mrf.mxu0
      %v971 = vadd.f32 0.0, %v970
      %972 = vmatmul.f32.gmra.mxu0 %v934
      %v973 = vpop.f32.mrf.mxu0
      %v974 = vadd.f32 0.0, %v973
      %975 = vmatmul.f32.gmra.mxu0 %v936
      %v976 = vpop.f32.mrf.mxu0
      %v977 = vadd.f32 0.0, %v976
      %978 = vdwg.mxu0
      %v979 = vtanh.pop %v956
      %v980 = vtanh.pop %v959
      %v981 = vtanh.pop %v962
      %v982 = vtanh.pop %v965
      %v983 = vtanh.pop %v968
      %v984 = vtanh.pop %v971
      %v985 = vtanh.pop %v974
      %v986 = vtanh.pop %v977
      %v987 = vmul.f32 %v979, %v324
      %v988 = vmul.f32 %v980, %v324
      %v989 = vmul.f32 %v981, %v324
      %v990 = vmul.f32 %v982, %v324
      %v991 = vmul.f32 %v983, %v324
      %v992 = vmul.f32 %v984, %v324
      %v993 = vmul.f32 %v985, %v324
      %v994 = vmul.f32 %v986, %v324
      %v995 = vsel %vm334, %v987, 0.0
      %996 = vadd.xlane.f32.xlu0 %v995
      %v997 = vpop.xlane.xlu0 %996
      %v998 = vsel %vm334, %v988, 0.0
      %999 = vadd.xlane.f32.xlu0 %v998
      %v1000 = vpop.xlane.xlu0 %999
      %v1001 = vsel %vm334, %v989, 0.0
      %1002 = vadd.xlane.f32.xlu0 %v1001
      %v1003 = vpop.xlane.xlu0 %1002
      %v1004 = vsel %vm334, %v990, 0.0
      %1005 = vadd.xlane.f32.xlu0 %v1004
      %v1006 = vpop.xlane.xlu0 %1005
      %v1007 = vsel %vm334, %v991, 0.0
      %1008 = vadd.xlane.f32.xlu0 %v1007
      %v1009 = vpop.xlane.xlu0 %1008
      %v1010 = vsel %vm334, %v992, 0.0
      %1011 = vadd.xlane.f32.xlu0 %v1010
      %v1012 = vpop.xlane.xlu0 %1011
      %v1013 = vsel %vm334, %v993, 0.0
      %1014 = vadd.xlane.f32.xlu0 %v1013
      %v1015 = vpop.xlane.xlu0 %1014
      %v1016 = vsel %vm334, %v994, 0.0
      %1017 = vadd.xlane.f32.xlu0 %v1016
      %v1018 = vpop.xlane.xlu0 %1017
      %vm1019 = vcmp.eq.s32.totalorder %v240, 5
      %v1020 = vsel %vm1019, 1, 0
      %vm1021 = vcmp.eq.s32.totalorder %v1020, 1
      %v1022 = vsel %vm1021, %v997, 0.0
      %v1023 = vsel %vm1021, %v1000, 0.0
      %v1024 = vsel %vm1021, %v1003, 0.0
      %v1025 = vsel %vm1021, %v1006, 0.0
      %v1026 = vsel %vm1021, %v1009, 0.0
      %v1027 = vsel %vm1021, %v1012, 0.0
      %v1028 = vsel %vm1021, %v1015, 0.0
      %v1029 = vsel %vm1021, %v1018, 0.0
      %v1030 = vadd.f32 %v898, %v1022
      %v1031 = vadd.f32 %v899, %v1023
      %v1032 = vadd.f32 %v900, %v1024
      %v1033 = vadd.f32 %v901, %v1025
      %v1034 = vadd.f32 %v902, %v1026
      %v1035 = vadd.f32 %v903, %v1027
      %v1036 = vadd.f32 %v904, %v1028
      %v1037 = vadd.f32 %v905, %v1029
      %1038 = vrot.lane.b32.xlu0 %v774, 64
      %v1039 = vpop.permute.xlu0 %1038
      %1040 = vrot.lane.b32.xlu0 %v775, 64
      %v1041 = vpop.permute.xlu0 %1040
      %1042 = vrot.lane.b32.xlu0 %v776, 64
      %v1043 = vpop.permute.xlu0 %1042
      %1044 = vrot.lane.b32.xlu0 %v777, 64
      %v1045 = vpop.permute.xlu0 %1044
      %1046 = vrot.lane.b32.xlu0 %v778, 64
      %v1047 = vpop.permute.xlu0 %1046
      %1048 = vrot.lane.b32.xlu0 %v779, 64
      %v1049 = vpop.permute.xlu0 %1048
      %1050 = vrot.lane.b32.xlu0 %v780, 64
      %v1051 = vpop.permute.xlu0 %1050
      %1052 = vrot.lane.b32.xlu0 %v781, 64
      %v1053 = vpop.permute.xlu0 %1052
      %v1054 = vsel %vm249, %v1039, 0
      %v1056 = vsel %vm249, %v1041, 0
      %v1058 = vsel %vm249, %v1043, 0
      %v1060 = vsel %vm249, %v1045, 0
      %v1062 = vsel %vm249, %v1047, 0
      %v1064 = vsel %vm249, %v1049, 0
      %v1066 = vsel %vm249, %v1051, 0
      %v1068 = vsel %vm249, %v1053, 0
      %1070 = vmatpush.msra.mxu0 0.0
      %1071 = vmatpush.msra.mxu0 0.0
      %1072 = vmatpush.msra.mxu0 0.0
      %1073 = vmatpush.msra.mxu0 0.0
      %1074 = vmatpush.msra.mxu0 0.0
      %1075 = vmatpush.msra.mxu0 0.0
      %1076 = vmatpush.msra.mxu0 0.0
      %1077 = vmatpush.msra.mxu0 0.0
      %1078 = vmatpush.msra.mxu0 0.0
      %1079 = vmatpush.msra.mxu0 0.0
      %1080 = vmatpush.msra.mxu0 0.0
      %1081 = vmatpush.msra.mxu0 0.0
      %1082 = vmatpush.msra.mxu0 %v229
      %1083 = vmatpush.msra.mxu0 %v228
      %1084 = vmatpush.msra.mxu0 %v227
      %1085 = vmatpush.msra.mxu0 %v226
      %1086 = vmatmul.f32.gmra.mxu0 %v1054
      %v1087 = vpop.f32.mrf.mxu0
      %v1088 = vadd.f32 0.0, %v1087
      %1089 = vmatmul.f32.gmra.mxu0 %v1056
      %v1090 = vpop.f32.mrf.mxu0
      %v1091 = vadd.f32 0.0, %v1090
      %1092 = vmatmul.f32.gmra.mxu0 %v1058
      %v1093 = vpop.f32.mrf.mxu0
      %v1094 = vadd.f32 0.0, %v1093
      %1095 = vmatmul.f32.gmra.mxu0 %v1060
      %v1096 = vpop.f32.mrf.mxu0
      %v1097 = vadd.f32 0.0, %v1096
      %1098 = vmatmul.f32.gmra.mxu0 %v1062
      %v1099 = vpop.f32.mrf.mxu0
      %v1100 = vadd.f32 0.0, %v1099
      %1101 = vmatmul.f32.gmra.mxu0 %v1064
      %v1102 = vpop.f32.mrf.mxu0
      %v1103 = vadd.f32 0.0, %v1102
      %1104 = vmatmul.f32.gmra.mxu0 %v1066
      %v1105 = vpop.f32.mrf.mxu0
      %v1106 = vadd.f32 0.0, %v1105
      %1107 = vmatmul.f32.gmra.mxu0 %v1068
      %v1108 = vpop.f32.mrf.mxu0
      %v1109 = vadd.f32 0.0, %v1108
      %1110 = vdwg.mxu0
      %v1111 = vtanh.pop %v1088
      %v1112 = vtanh.pop %v1091
      %v1113 = vtanh.pop %v1094
      %v1114 = vtanh.pop %v1097
      %v1115 = vtanh.pop %v1100
      %v1116 = vtanh.pop %v1103
      %v1117 = vtanh.pop %v1106
      %v1118 = vtanh.pop %v1109
      %v1119 = vmul.f32 %v1111, %v324
      %v1120 = vmul.f32 %v1112, %v324
      %v1121 = vmul.f32 %v1113, %v324
      %v1122 = vmul.f32 %v1114, %v324
      %v1123 = vmul.f32 %v1115, %v324
      %v1124 = vmul.f32 %v1116, %v324
      %v1125 = vmul.f32 %v1117, %v324
      %v1126 = vmul.f32 %v1118, %v324
      %v1127 = vsel %vm334, %v1119, 0.0
      %1128 = vadd.xlane.f32.xlu0 %v1127
      %v1129 = vpop.xlane.xlu0 %1128
      %v1130 = vsel %vm334, %v1120, 0.0
      %1131 = vadd.xlane.f32.xlu0 %v1130
      %v1132 = vpop.xlane.xlu0 %1131
      %v1133 = vsel %vm334, %v1121, 0.0
      %1134 = vadd.xlane.f32.xlu0 %v1133
      %v1135 = vpop.xlane.xlu0 %1134
      %v1136 = vsel %vm334, %v1122, 0.0
      %1137 = vadd.xlane.f32.xlu0 %v1136
      %v1138 = vpop.xlane.xlu0 %1137
      %v1139 = vsel %vm334, %v1123, 0.0
      %1140 = vadd.xlane.f32.xlu0 %v1139
      %v1141 = vpop.xlane.xlu0 %1140
      %v1142 = vsel %vm334, %v1124, 0.0
      %1143 = vadd.xlane.f32.xlu0 %v1142
      %v1144 = vpop.xlane.xlu0 %1143
      %v1145 = vsel %vm334, %v1125, 0.0
      %1146 = vadd.xlane.f32.xlu0 %v1145
      %v1147 = vpop.xlane.xlu0 %1146
      %v1148 = vsel %vm334, %v1126, 0.0
      %1149 = vadd.xlane.f32.xlu0 %v1148
      %v1150 = vpop.xlane.xlu0 %1149
      %vm1151 = vcmp.eq.s32.totalorder %v240, 6
      %v1152 = vsel %vm1151, 1, 0
      %vm1153 = vcmp.eq.s32.totalorder %v1152, 1
      %v1154 = vsel %vm1153, %v1129, 0.0
      %v1155 = vsel %vm1153, %v1132, 0.0
      %v1156 = vsel %vm1153, %v1135, 0.0
      %v1157 = vsel %vm1153, %v1138, 0.0
      %v1158 = vsel %vm1153, %v1141, 0.0
      %v1159 = vsel %vm1153, %v1144, 0.0
      %v1160 = vsel %vm1153, %v1147, 0.0
      %v1161 = vsel %vm1153, %v1150, 0.0
      %v1162 = vadd.f32 %v1030, %v1154
      %v1163 = vadd.f32 %v1031, %v1155
      %v1164 = vadd.f32 %v1032, %v1156
      %v1165 = vadd.f32 %v1033, %v1157
      %v1166 = vadd.f32 %v1034, %v1158
      %v1167 = vadd.f32 %v1035, %v1159
      %v1168 = vadd.f32 %v1036, %v1160
      %v1169 = vadd.f32 %v1037, %v1161
      %1170 = vrot.lane.b32.xlu0 %v774, 32
      %v1171 = vpop.permute.xlu0 %1170
      %1172 = vrot.lane.b32.xlu0 %v775, 32
      %v1173 = vpop.permute.xlu0 %1172
      %1174 = vrot.lane.b32.xlu0 %v776, 32
      %v1175 = vpop.permute.xlu0 %1174
      %1176 = vrot.lane.b32.xlu0 %v777, 32
      %v1177 = vpop.permute.xlu0 %1176
      %1178 = vrot.lane.b32.xlu0 %v778, 32
      %v1179 = vpop.permute.xlu0 %1178
      %1180 = vrot.lane.b32.xlu0 %v779, 32
      %v1181 = vpop.permute.xlu0 %1180
      %1182 = vrot.lane.b32.xlu0 %v780, 32
      %v1183 = vpop.permute.xlu0 %1182
      %1184 = vrot.lane.b32.xlu0 %v781, 32
      %v1185 = vpop.permute.xlu0 %1184
      %v1186 = vsel %vm249, %v1171, 0
      %v1188 = vsel %vm249, %v1173, 0
      %v1190 = vsel %vm249, %v1175, 0
      %v1192 = vsel %vm249, %v1177, 0
      %v1194 = vsel %vm249, %v1179, 0
      %v1196 = vsel %vm249, %v1181, 0
      %v1198 = vsel %vm249, %v1183, 0
      %v1200 = vsel %vm249, %v1185, 0
      %1202 = vmatpush.msra.mxu0 0.0
      %1203 = vmatpush.msra.mxu0 0.0
      %1204 = vmatpush.msra.mxu0 0.0
      %1205 = vmatpush.msra.mxu0 0.0
      %1206 = vmatpush.msra.mxu0 0.0
      %1207 = vmatpush.msra.mxu0 0.0
      %1208 = vmatpush.msra.mxu0 0.0
      %1209 = vmatpush.msra.mxu0 0.0
      %1210 = vmatpush.msra.mxu0 0.0
      %1211 = vmatpush.msra.mxu0 0.0
      %1212 = vmatpush.msra.mxu0 0.0
      %1213 = vmatpush.msra.mxu0 0.0
      %1214 = vmatpush.msra.mxu0 %v229
      %1215 = vmatpush.msra.mxu0 %v228
      %1216 = vmatpush.msra.mxu0 %v227
      %1217 = vmatpush.msra.mxu0 %v226
      %1218 = vmatmul.f32.gmra.mxu0 %v1186
      %v1219 = vpop.f32.mrf.mxu0
      %v1220 = vadd.f32 0.0, %v1219
      %1221 = vmatmul.f32.gmra.mxu0 %v1188
      %v1222 = vpop.f32.mrf.mxu0
      %v1223 = vadd.f32 0.0, %v1222
      %1224 = vmatmul.f32.gmra.mxu0 %v1190
      %v1225 = vpop.f32.mrf.mxu0
      %v1226 = vadd.f32 0.0, %v1225
      %1227 = vmatmul.f32.gmra.mxu0 %v1192
      %v1228 = vpop.f32.mrf.mxu0
      %v1229 = vadd.f32 0.0, %v1228
      %1230 = vmatmul.f32.gmra.mxu0 %v1194
      %v1231 = vpop.f32.mrf.mxu0
      %v1232 = vadd.f32 0.0, %v1231
      %1233 = vmatmul.f32.gmra.mxu0 %v1196
      %v1234 = vpop.f32.mrf.mxu0
      %v1235 = vadd.f32 0.0, %v1234
      %1236 = vmatmul.f32.gmra.mxu0 %v1198
      %v1237 = vpop.f32.mrf.mxu0
      %v1238 = vadd.f32 0.0, %v1237
      %1239 = vmatmul.f32.gmra.mxu0 %v1200
      %v1240 = vpop.f32.mrf.mxu0
      %v1241 = vadd.f32 0.0, %v1240
      %1242 = vdwg.mxu0
      %v1243 = vtanh.pop %v1220
      %v1244 = vtanh.pop %v1223
      %v1245 = vtanh.pop %v1226
      %v1246 = vtanh.pop %v1229
      %v1247 = vtanh.pop %v1232
      %v1248 = vtanh.pop %v1235
      %v1249 = vtanh.pop %v1238
      %v1250 = vtanh.pop %v1241
      %v1251 = vmul.f32 %v1243, %v324
      %v1252 = vmul.f32 %v1244, %v324
      %v1253 = vmul.f32 %v1245, %v324
      %v1254 = vmul.f32 %v1246, %v324
      %v1255 = vmul.f32 %v1247, %v324
      %v1256 = vmul.f32 %v1248, %v324
      %v1257 = vmul.f32 %v1249, %v324
      %v1258 = vmul.f32 %v1250, %v324
      %v1259 = vsel %vm334, %v1251, 0.0
      %1260 = vadd.xlane.f32.xlu0 %v1259
      %v1261 = vpop.xlane.xlu0 %1260
      %v1262 = vsel %vm334, %v1252, 0.0
      %1263 = vadd.xlane.f32.xlu0 %v1262
      %v1264 = vpop.xlane.xlu0 %1263
      %v1265 = vsel %vm334, %v1253, 0.0
      %1266 = vadd.xlane.f32.xlu0 %v1265
      %v1267 = vpop.xlane.xlu0 %1266
      %v1268 = vsel %vm334, %v1254, 0.0
      %1269 = vadd.xlane.f32.xlu0 %v1268
      %v1270 = vpop.xlane.xlu0 %1269
      %v1271 = vsel %vm334, %v1255, 0.0
      %1272 = vadd.xlane.f32.xlu0 %v1271
      %v1273 = vpop.xlane.xlu0 %1272
      %v1274 = vsel %vm334, %v1256, 0.0
      %1275 = vadd.xlane.f32.xlu0 %v1274
      %v1276 = vpop.xlane.xlu0 %1275
      %v1277 = vsel %vm334, %v1257, 0.0
      %1278 = vadd.xlane.f32.xlu0 %v1277
      %v1279 = vpop.xlane.xlu0 %1278
      %v1280 = vsel %vm334, %v1258, 0.0
      %1281 = vadd.xlane.f32.xlu0 %v1280
      %v1282 = vpop.xlane.xlu0 %1281
      %vm1283 = vcmp.eq.s32.totalorder %v240, 7
      %v1284 = vsel %vm1283, 1, 0
      %vm1285 = vcmp.eq.s32.totalorder %v1284, 1
      %v1286 = vsel %vm1285, %v1261, 0.0
      %v1287 = vsel %vm1285, %v1264, 0.0
      %v1288 = vsel %vm1285, %v1267, 0.0
      %v1289 = vsel %vm1285, %v1270, 0.0
      %v1290 = vsel %vm1285, %v1273, 0.0
      %v1291 = vsel %vm1285, %v1276, 0.0
      %v1292 = vsel %vm1285, %v1279, 0.0
      %v1293 = vsel %vm1285, %v1282, 0.0
      %v1294 = vadd.f32 %v1162, %v1286
      %v1295 = vadd.f32 %v1163, %v1287
      %v1296 = vadd.f32 %v1164, %v1288
      %v1297 = vadd.f32 %v1165, %v1289
      %v1298 = vadd.f32 %v1166, %v1290
      %v1299 = vadd.f32 %v1167, %v1291
      %v1300 = vadd.f32 %v1168, %v1292
      %v1301 = vadd.f32 %v1169, %v1293
      %vm1302 = vcmp.ne.s32.totalorder %v231, 0
      %vm1303 = vcmp.ne.s32.totalorder %v232, 0
      %vm1304 = vcmp.ne.s32.totalorder %v233, 0
      %vm1305 = vcmp.ne.s32.totalorder %v234, 0
      %vm1306 = vcmp.ne.s32.totalorder %v235, 0
      %vm1307 = vcmp.ne.s32.totalorder %v236, 0
      %vm1308 = vcmp.ne.s32.totalorder %v237, 0
      %vm1309 = vcmp.ne.s32.totalorder %v238, 0
      %v1310 = vsel %vm1302, %v1294, -inf
      %v1311 = vsel %vm1303, %v1295, -inf
      %v1312 = vsel %vm1304, %v1296, -inf
      %v1313 = vsel %vm1305, %v1297, -inf
      %v1314 = vsel %vm1306, %v1298, -inf
      %v1315 = vsel %vm1307, %v1299, -inf
      %v1316 = vsel %vm1308, %v1300, -inf
      %v1317 = vsel %vm1309, %v1301, -inf
      %vm1318 = vcmask 64512
      %v1319 = vsel %vm1318, %v1310, -inf
      %1320 = vmax.xlane.f32.xlu0 %v1319
      %v1321 = vpop.xlane.xlu0 %1320
      %v1322 = vsel %vm1318, %v1311, -inf
      %1323 = vmax.xlane.f32.xlu0 %v1322
      %v1324 = vpop.xlane.xlu0 %1323
      %v1325 = vsel %vm1318, %v1312, -inf
      %1326 = vmax.xlane.f32.xlu0 %v1325
      %v1327 = vpop.xlane.xlu0 %1326
      %v1328 = vsel %vm1318, %v1313, -inf
      %1329 = vmax.xlane.f32.xlu0 %v1328
      %v1330 = vpop.xlane.xlu0 %1329
      %v1331 = vsel %vm1318, %v1314, -inf
      %1332 = vmax.xlane.f32.xlu0 %v1331
      %v1333 = vpop.xlane.xlu0 %1332
      %v1334 = vsel %vm1318, %v1315, -inf
      %1335 = vmax.xlane.f32.xlu0 %v1334
      %v1336 = vpop.xlane.xlu0 %1335
      %v1337 = vsel %vm1318, %v1316, -inf
      %1338 = vmax.xlane.f32.xlu0 %v1337
      %v1339 = vpop.xlane.xlu0 %1338
      %v1340 = vsel %vm1318, %v1317, -inf
      %1341 = vmax.xlane.f32.xlu0 %v1340
      %v1342 = vpop.xlane.xlu0 %1341
      %v1343 = vsub.f32 %v1310, %v1321
      %v1344 = vsub.f32 %v1311, %v1324
      %v1345 = vsub.f32 %v1312, %v1327
      %v1346 = vsub.f32 %v1313, %v1330
      %v1347 = vsub.f32 %v1314, %v1333
      %v1348 = vsub.f32 %v1315, %v1336
      %v1349 = vsub.f32 %v1316, %v1339
      %v1350 = vsub.f32 %v1317, %v1342
      %v1351 = vmul.f32 %v1343, 1.442695
      %v1352 = vpow.pop %v1351
      %v1353 = vmul.f32 %v1344, 1.442695
      %v1354 = vpow.pop %v1353
      %v1355 = vmul.f32 %v1345, 1.442695
      %v1356 = vpow.pop %v1355
      %v1357 = vmul.f32 %v1346, 1.442695
      %v1358 = vpow.pop %v1357
      %v1359 = vmul.f32 %v1347, 1.442695
      %v1360 = vpow.pop %v1359
      %v1361 = vmul.f32 %v1348, 1.442695
      %v1362 = vpow.pop %v1361
      %v1363 = vmul.f32 %v1349, 1.442695
      %v1364 = vpow.pop %v1363
      %v1365 = vmul.f32 %v1350, 1.442695
      %v1366 = vpow.pop %v1365
      %v1367 = vsel %vm1318, %v1352, 0.0
      %1368 = vadd.xlane.f32.xlu0 %v1367
      %v1369 = vpop.xlane.xlu0 %1368
      %v1370 = vsel %vm1318, %v1354, 0.0
      %1371 = vadd.xlane.f32.xlu0 %v1370
      %v1372 = vpop.xlane.xlu0 %1371
      %v1373 = vsel %vm1318, %v1356, 0.0
      %1374 = vadd.xlane.f32.xlu0 %v1373
      %v1375 = vpop.xlane.xlu0 %1374
      %v1376 = vsel %vm1318, %v1358, 0.0
      %1377 = vadd.xlane.f32.xlu0 %v1376
      %v1378 = vpop.xlane.xlu0 %1377
      %v1379 = vsel %vm1318, %v1360, 0.0
      %1380 = vadd.xlane.f32.xlu0 %v1379
      %v1381 = vpop.xlane.xlu0 %1380
      %v1382 = vsel %vm1318, %v1362, 0.0
      %1383 = vadd.xlane.f32.xlu0 %v1382
      %v1384 = vpop.xlane.xlu0 %1383
      %v1385 = vsel %vm1318, %v1364, 0.0
      %1386 = vadd.xlane.f32.xlu0 %v1385
      %v1387 = vpop.xlane.xlu0 %1386
      %v1388 = vsel %vm1318, %v1366, 0.0
      %1389 = vadd.xlane.f32.xlu0 %v1388
      %v1390 = vpop.xlane.xlu0 %1389
      %v1391 = vrcp.pop %v1369
      %v1392 = vrcp.pop %v1372
      %v1393 = vrcp.pop %v1375
      %v1394 = vrcp.pop %v1378
      %v1395 = vrcp.pop %v1381
      %v1396 = vrcp.pop %v1384
      %v1397 = vrcp.pop %v1387
      %v1398 = vrcp.pop %v1390
      %v1399 = vmul.f32 %v1369, %v1391
      %v1400 = vmul.f32 %v1372, %v1392
      %v1401 = vmul.f32 %v1375, %v1393
      %v1402 = vmul.f32 %v1378, %v1394
      %v1403 = vmul.f32 %v1381, %v1395
      %v1404 = vmul.f32 %v1384, %v1396
      %v1405 = vmul.f32 %v1387, %v1397
      %v1406 = vmul.f32 %v1390, %v1398
      %v1407 = vsub.f32 2.0, %v1399
      %v1408 = vsub.f32 2.0, %v1400
      %v1409 = vsub.f32 2.0, %v1401
      %v1410 = vsub.f32 2.0, %v1402
      %v1411 = vsub.f32 2.0, %v1403
      %v1412 = vsub.f32 2.0, %v1404
      %v1413 = vsub.f32 2.0, %v1405
      %v1414 = vsub.f32 2.0, %v1406
      %v1415 = vmul.f32 %v1391, %v1407
      %v1416 = vmul.f32 %v1392, %v1408
      %v1417 = vmul.f32 %v1393, %v1409
      %v1418 = vmul.f32 %v1394, %v1410
      %v1419 = vmul.f32 %v1395, %v1411
      %v1420 = vmul.f32 %v1396, %v1412
      %v1421 = vmul.f32 %v1397, %v1413
      %v1422 = vmul.f32 %v1398, %v1414
      %1424 = vset.pattern.permute.xlu0 0
      %1425 = vperm.xlu0 %1424, %v1352
      %v1426 = vpop.permute.xlu0 %1425
      %1429 = vset.pattern.permute.xlu0 0
      %1430 = vperm.xlu0 %1429, %v1354
      %v1431 = vpop.permute.xlu0 %1430
      %1434 = vset.pattern.permute.xlu0 0
      %1435 = vperm.xlu0 %1434, %v1356
      %v1436 = vpop.permute.xlu0 %1435
      %1439 = vset.pattern.permute.xlu0 0
      %1440 = vperm.xlu0 %1439, %v1358
      %v1441 = vpop.permute.xlu0 %1440
      %1444 = vset.pattern.permute.xlu0 0
      %1445 = vperm.xlu0 %1444, %v1360
      %v1446 = vpop.permute.xlu0 %1445
      %1449 = vset.pattern.permute.xlu0 0
      %1450 = vperm.xlu0 %1449, %v1362
      %v1451 = vpop.permute.xlu0 %1450
      %1454 = vset.pattern.permute.xlu0 0
      %1455 = vperm.xlu0 %1454, %v1364
      %v1456 = vpop.permute.xlu0 %1455
      %1459 = vset.pattern.permute.xlu0 0
      %1460 = vperm.xlu0 %1459, %v1366
      %v1461 = vpop.permute.xlu0 %1460
      %v1463 = vmul.f32 %v1426, %v241
      %v1464 = vmul.f32 %v1431, %v242
      %v1465 = vmul.f32 %v1436, %v243
      %v1466 = vmul.f32 %v1441, %v244
      %v1467 = vmul.f32 %v1446, %v245
      %v1468 = vmul.f32 %v1451, %v246
      %v1469 = vmul.f32 %v1456, %v247
      %v1470 = vmul.f32 %v1461, %v248
      %v1471 = vadd.f32 %v1463, 0.0
      %v1472 = vadd.f32 %v1464, 0.0
      %v1473 = vadd.f32 %v1465, 0.0
      %v1474 = vadd.f32 %v1466, 0.0
      %v1475 = vadd.f32 %v1467, 0.0
      %v1476 = vadd.f32 %v1468, 0.0
      %v1477 = vadd.f32 %v1469, 0.0
      %v1478 = vadd.f32 %v1470, 0.0
      %1479 = vset.pattern.permute.xlu0 1
      %1480 = vperm.xlu0 %1479, %v1352
      %v1481 = vpop.permute.xlu0 %1480
      %1483 = vset.pattern.permute.xlu0 1
      %1484 = vperm.xlu0 %1483, %v1354
      %v1485 = vpop.permute.xlu0 %1484
      %1487 = vset.pattern.permute.xlu0 1
      %1488 = vperm.xlu0 %1487, %v1356
      %v1489 = vpop.permute.xlu0 %1488
      %1491 = vset.pattern.permute.xlu0 1
      %1492 = vperm.xlu0 %1491, %v1358
      %v1493 = vpop.permute.xlu0 %1492
      %1495 = vset.pattern.permute.xlu0 1
      %1496 = vperm.xlu0 %1495, %v1360
      %v1497 = vpop.permute.xlu0 %1496
      %1499 = vset.pattern.permute.xlu0 1
      %1500 = vperm.xlu0 %1499, %v1362
      %v1501 = vpop.permute.xlu0 %1500
      %1503 = vset.pattern.permute.xlu0 1
      %1504 = vperm.xlu0 %1503, %v1364
      %v1505 = vpop.permute.xlu0 %1504
      %1507 = vset.pattern.permute.xlu0 1
      %1508 = vperm.xlu0 %1507, %v1366
      %v1509 = vpop.permute.xlu0 %1508
      %v1511 = vmul.f32 %v1481, %v241
      %v1512 = vmul.f32 %v1485, %v242
      %v1513 = vmul.f32 %v1489, %v243
      %v1514 = vmul.f32 %v1493, %v244
      %v1515 = vmul.f32 %v1497, %v245
      %v1516 = vmul.f32 %v1501, %v246
      %v1517 = vmul.f32 %v1505, %v247
      %v1518 = vmul.f32 %v1509, %v248
      %1527 = vrot.lane.b32.xlu0 %v1511, 96
      %v1528 = vpop.permute.xlu0 %1527
      %1529 = vrot.lane.b32.xlu0 %v1512, 96
      %v1530 = vpop.permute.xlu0 %1529
      %1531 = vrot.lane.b32.xlu0 %v1513, 96
      %v1532 = vpop.permute.xlu0 %1531
      %1533 = vrot.lane.b32.xlu0 %v1514, 96
      %v1534 = vpop.permute.xlu0 %1533
      %1535 = vrot.lane.b32.xlu0 %v1515, 96
      %v1536 = vpop.permute.xlu0 %1535
      %1537 = vrot.lane.b32.xlu0 %v1516, 96
      %v1538 = vpop.permute.xlu0 %1537
      %1539 = vrot.lane.b32.xlu0 %v1517, 96
      %v1540 = vpop.permute.xlu0 %1539
      %1541 = vrot.lane.b32.xlu0 %v1518, 96
      %v1542 = vpop.permute.xlu0 %1541
      %v1551 = vadd.f32 %v1471, %v1528
      %v1552 = vadd.f32 %v1472, %v1530
      %v1553 = vadd.f32 %v1473, %v1532
      %v1554 = vadd.f32 %v1474, %v1534
      %v1555 = vadd.f32 %v1475, %v1536
      %v1556 = vadd.f32 %v1476, %v1538
      %v1557 = vadd.f32 %v1477, %v1540
      %v1558 = vadd.f32 %v1478, %v1542
      %1559 = vset.pattern.permute.xlu0 2
      %1560 = vperm.xlu0 %1559, %v1352
      %v1561 = vpop.permute.xlu0 %1560
      %1563 = vset.pattern.permute.xlu0 2
      %1564 = vperm.xlu0 %1563, %v1354
      %v1565 = vpop.permute.xlu0 %1564
      %1567 = vset.pattern.permute.xlu0 2
      %1568 = vperm.xlu0 %1567, %v1356
      %v1569 = vpop.permute.xlu0 %1568
      %1571 = vset.pattern.permute.xlu0 2
      %1572 = vperm.xlu0 %1571, %v1358
      %v1573 = vpop.permute.xlu0 %1572
      %1575 = vset.pattern.permute.xlu0 2
      %1576 = vperm.xlu0 %1575, %v1360
      %v1577 = vpop.permute.xlu0 %1576
      %1579 = vset.pattern.permute.xlu0 2
      %1580 = vperm.xlu0 %1579, %v1362
      %v1581 = vpop.permute.xlu0 %1580
      %1583 = vset.pattern.permute.xlu0 2
      %1584 = vperm.xlu0 %1583, %v1364
      %v1585 = vpop.permute.xlu0 %1584
      %1587 = vset.pattern.permute.xlu0 2
      %1588 = vperm.xlu0 %1587, %v1366
      %v1589 = vpop.permute.xlu0 %1588
      %v1591 = vmul.f32 %v1561, %v241
      %v1592 = vmul.f32 %v1565, %v242
      %v1593 = vmul.f32 %v1569, %v243
      %v1594 = vmul.f32 %v1573, %v244
      %v1595 = vmul.f32 %v1577, %v245
      %v1596 = vmul.f32 %v1581, %v246
      %v1597 = vmul.f32 %v1585, %v247
      %v1598 = vmul.f32 %v1589, %v248
      %1607 = vrot.lane.b32.xlu0 %v1591, 64
      %v1608 = vpop.permute.xlu0 %1607
      %1609 = vrot.lane.b32.xlu0 %v1592, 64
      %v1610 = vpop.permute.xlu0 %1609
      %1611 = vrot.lane.b32.xlu0 %v1593, 64
      %v1612 = vpop.permute.xlu0 %1611
      %1613 = vrot.lane.b32.xlu0 %v1594, 64
      %v1614 = vpop.permute.xlu0 %1613
      %1615 = vrot.lane.b32.xlu0 %v1595, 64
      %v1616 = vpop.permute.xlu0 %1615
      %1617 = vrot.lane.b32.xlu0 %v1596, 64
      %v1618 = vpop.permute.xlu0 %1617
      %1619 = vrot.lane.b32.xlu0 %v1597, 64
      %v1620 = vpop.permute.xlu0 %1619
      %1621 = vrot.lane.b32.xlu0 %v1598, 64
      %v1622 = vpop.permute.xlu0 %1621
      %v1631 = vadd.f32 %v1551, %v1608
      %v1632 = vadd.f32 %v1552, %v1610
      %v1633 = vadd.f32 %v1553, %v1612
      %v1634 = vadd.f32 %v1554, %v1614
      %v1635 = vadd.f32 %v1555, %v1616
      %v1636 = vadd.f32 %v1556, %v1618
      %v1637 = vadd.f32 %v1557, %v1620
      %v1638 = vadd.f32 %v1558, %v1622
      %1639 = vset.pattern.permute.xlu0 3
      %1640 = vperm.xlu0 %1639, %v1352
      %v1641 = vpop.permute.xlu0 %1640
      %1643 = vset.pattern.permute.xlu0 3
      %1644 = vperm.xlu0 %1643, %v1354
      %v1645 = vpop.permute.xlu0 %1644
      %1647 = vset.pattern.permute.xlu0 3
      %1648 = vperm.xlu0 %1647, %v1356
      %v1649 = vpop.permute.xlu0 %1648
      %1651 = vset.pattern.permute.xlu0 3
      %1652 = vperm.xlu0 %1651, %v1358
      %v1653 = vpop.permute.xlu0 %1652
      %1655 = vset.pattern.permute.xlu0 3
      %1656 = vperm.xlu0 %1655, %v1360
      %v1657 = vpop.permute.xlu0 %1656
      %1659 = vset.pattern.permute.xlu0 3
      %1660 = vperm.xlu0 %1659, %v1362
      %v1661 = vpop.permute.xlu0 %1660
      %1663 = vset.pattern.permute.xlu0 3
      %1664 = vperm.xlu0 %1663, %v1364
      %v1665 = vpop.permute.xlu0 %1664
      %1667 = vset.pattern.permute.xlu0 3
      %1668 = vperm.xlu0 %1667, %v1366
      %v1669 = vpop.permute.xlu0 %1668
      %v1671 = vmul.f32 %v1641, %v241
      %v1672 = vmul.f32 %v1645, %v242
      %v1673 = vmul.f32 %v1649, %v243
      %v1674 = vmul.f32 %v1653, %v244
      %v1675 = vmul.f32 %v1657, %v245
      %v1676 = vmul.f32 %v1661, %v246
      %v1677 = vmul.f32 %v1665, %v247
      %v1678 = vmul.f32 %v1669, %v248
      %1687 = vrot.lane.b32.xlu0 %v1671, 32
      %v1688 = vpop.permute.xlu0 %1687
      %1689 = vrot.lane.b32.xlu0 %v1672, 32
      %v1690 = vpop.permute.xlu0 %1689
      %1691 = vrot.lane.b32.xlu0 %v1673, 32
      %v1692 = vpop.permute.xlu0 %1691
      %1693 = vrot.lane.b32.xlu0 %v1674, 32
      %v1694 = vpop.permute.xlu0 %1693
      %1695 = vrot.lane.b32.xlu0 %v1675, 32
      %v1696 = vpop.permute.xlu0 %1695
      %1697 = vrot.lane.b32.xlu0 %v1676, 32
      %v1698 = vpop.permute.xlu0 %1697
      %1699 = vrot.lane.b32.xlu0 %v1677, 32
      %v1700 = vpop.permute.xlu0 %1699
      %1701 = vrot.lane.b32.xlu0 %v1678, 32
      %v1702 = vpop.permute.xlu0 %1701
      %v1711 = vadd.f32 %v1631, %v1688
      %v1712 = vadd.f32 %v1632, %v1690
      %v1713 = vadd.f32 %v1633, %v1692
      %v1714 = vadd.f32 %v1634, %v1694
      %v1715 = vadd.f32 %v1635, %v1696
      %v1716 = vadd.f32 %v1636, %v1698
      %v1717 = vadd.f32 %v1637, %v1700
      %v1718 = vadd.f32 %v1638, %v1702
      %1719 = vset.pattern.permute.xlu0 4
      %1720 = vperm.xlu0 %1719, %v1352
      %v1721 = vpop.permute.xlu0 %1720
      %1723 = vset.pattern.permute.xlu0 4
      %1724 = vperm.xlu0 %1723, %v1354
      %v1725 = vpop.permute.xlu0 %1724
      %1727 = vset.pattern.permute.xlu0 4
      %1728 = vperm.xlu0 %1727, %v1356
      %v1729 = vpop.permute.xlu0 %1728
      %1731 = vset.pattern.permute.xlu0 4
      %1732 = vperm.xlu0 %1731, %v1358
      %v1733 = vpop.permute.xlu0 %1732
      %1735 = vset.pattern.permute.xlu0 4
      %1736 = vperm.xlu0 %1735, %v1360
      %v1737 = vpop.permute.xlu0 %1736
      %1739 = vset.pattern.permute.xlu0 4
      %1740 = vperm.xlu0 %1739, %v1362
      %v1741 = vpop.permute.xlu0 %1740
      %1743 = vset.pattern.permute.xlu0 4
      %1744 = vperm.xlu0 %1743, %v1364
      %v1745 = vpop.permute.xlu0 %1744
      %1747 = vset.pattern.permute.xlu0 4
      %1748 = vperm.xlu0 %1747, %v1366
      %v1749 = vpop.permute.xlu0 %1748
      %v1751 = vmul.f32 %v1721, %v774
      %v1752 = vmul.f32 %v1725, %v775
      %v1753 = vmul.f32 %v1729, %v776
      %v1754 = vmul.f32 %v1733, %v777
      %v1755 = vmul.f32 %v1737, %v778
      %v1756 = vmul.f32 %v1741, %v779
      %v1757 = vmul.f32 %v1745, %v780
      %v1758 = vmul.f32 %v1749, %v781
      %v1759 = vadd.f32 %v1711, %v1751
      %v1760 = vadd.f32 %v1712, %v1752
      %v1761 = vadd.f32 %v1713, %v1753
      %v1762 = vadd.f32 %v1714, %v1754
      %v1763 = vadd.f32 %v1715, %v1755
      %v1764 = vadd.f32 %v1716, %v1756
      %v1765 = vadd.f32 %v1717, %v1757
      %v1766 = vadd.f32 %v1718, %v1758
      %1767 = vset.pattern.permute.xlu0 5
      %1768 = vperm.xlu0 %1767, %v1352
      %v1769 = vpop.permute.xlu0 %1768
      %1771 = vset.pattern.permute.xlu0 5
      %1772 = vperm.xlu0 %1771, %v1354
      %v1773 = vpop.permute.xlu0 %1772
      %1775 = vset.pattern.permute.xlu0 5
      %1776 = vperm.xlu0 %1775, %v1356
      %v1777 = vpop.permute.xlu0 %1776
      %1779 = vset.pattern.permute.xlu0 5
      %1780 = vperm.xlu0 %1779, %v1358
      %v1781 = vpop.permute.xlu0 %1780
      %1783 = vset.pattern.permute.xlu0 5
      %1784 = vperm.xlu0 %1783, %v1360
      %v1785 = vpop.permute.xlu0 %1784
      %1787 = vset.pattern.permute.xlu0 5
      %1788 = vperm.xlu0 %1787, %v1362
      %v1789 = vpop.permute.xlu0 %1788
      %1791 = vset.pattern.permute.xlu0 5
      %1792 = vperm.xlu0 %1791, %v1364
      %v1793 = vpop.permute.xlu0 %1792
      %1795 = vset.pattern.permute.xlu0 5
      %1796 = vperm.xlu0 %1795, %v1366
      %v1797 = vpop.permute.xlu0 %1796
      %v1799 = vmul.f32 %v1769, %v774
      %v1800 = vmul.f32 %v1773, %v775
      %v1801 = vmul.f32 %v1777, %v776
      %v1802 = vmul.f32 %v1781, %v777
      %v1803 = vmul.f32 %v1785, %v778
      %v1804 = vmul.f32 %v1789, %v779
      %v1805 = vmul.f32 %v1793, %v780
      %v1806 = vmul.f32 %v1797, %v781
      %1815 = vrot.lane.b32.xlu0 %v1799, 96
      %v1816 = vpop.permute.xlu0 %1815
      %1817 = vrot.lane.b32.xlu0 %v1800, 96
      %v1818 = vpop.permute.xlu0 %1817
      %1819 = vrot.lane.b32.xlu0 %v1801, 96
      %v1820 = vpop.permute.xlu0 %1819
      %1821 = vrot.lane.b32.xlu0 %v1802, 96
      %v1822 = vpop.permute.xlu0 %1821
      %1823 = vrot.lane.b32.xlu0 %v1803, 96
      %v1824 = vpop.permute.xlu0 %1823
      %1825 = vrot.lane.b32.xlu0 %v1804, 96
      %v1826 = vpop.permute.xlu0 %1825
      %1827 = vrot.lane.b32.xlu0 %v1805, 96
      %v1828 = vpop.permute.xlu0 %1827
      %1829 = vrot.lane.b32.xlu0 %v1806, 96
      %v1830 = vpop.permute.xlu0 %1829
      %v1839 = vadd.f32 %v1759, %v1816
      %v1840 = vadd.f32 %v1760, %v1818
      %v1841 = vadd.f32 %v1761, %v1820
      %v1842 = vadd.f32 %v1762, %v1822
      %v1843 = vadd.f32 %v1763, %v1824
      %v1844 = vadd.f32 %v1764, %v1826
      %v1845 = vadd.f32 %v1765, %v1828
      %v1846 = vadd.f32 %v1766, %v1830
      %1847 = vset.pattern.permute.xlu0 6
      %1848 = vperm.xlu0 %1847, %v1352
      %v1849 = vpop.permute.xlu0 %1848
      %1851 = vset.pattern.permute.xlu0 6
      %1852 = vperm.xlu0 %1851, %v1354
      %v1853 = vpop.permute.xlu0 %1852
      %1855 = vset.pattern.permute.xlu0 6
      %1856 = vperm.xlu0 %1855, %v1356
      %v1857 = vpop.permute.xlu0 %1856
      %1859 = vset.pattern.permute.xlu0 6
      %1860 = vperm.xlu0 %1859, %v1358
      %v1861 = vpop.permute.xlu0 %1860
      %1863 = vset.pattern.permute.xlu0 6
      %1864 = vperm.xlu0 %1863, %v1360
      %v1865 = vpop.permute.xlu0 %1864
      %1867 = vset.pattern.permute.xlu0 6
      %1868 = vperm.xlu0 %1867, %v1362
      %v1869 = vpop.permute.xlu0 %1868
      %1871 = vset.pattern.permute.xlu0 6
      %1872 = vperm.xlu0 %1871, %v1364
      %v1873 = vpop.permute.xlu0 %1872
      %1875 = vset.pattern.permute.xlu0 6
      %1876 = vperm.xlu0 %1875, %v1366
      %v1877 = vpop.permute.xlu0 %1876
      %v1879 = vmul.f32 %v1849, %v774
      %v1880 = vmul.f32 %v1853, %v775
      %v1881 = vmul.f32 %v1857, %v776
      %v1882 = vmul.f32 %v1861, %v777
      %v1883 = vmul.f32 %v1865, %v778
      %v1884 = vmul.f32 %v1869, %v779
      %v1885 = vmul.f32 %v1873, %v780
      %v1886 = vmul.f32 %v1877, %v781
      %1895 = vrot.lane.b32.xlu0 %v1879, 64
      %v1896 = vpop.permute.xlu0 %1895
      %1897 = vrot.lane.b32.xlu0 %v1880, 64
      %v1898 = vpop.permute.xlu0 %1897
      %1899 = vrot.lane.b32.xlu0 %v1881, 64
      %v1900 = vpop.permute.xlu0 %1899
      %1901 = vrot.lane.b32.xlu0 %v1882, 64
      %v1902 = vpop.permute.xlu0 %1901
      %1903 = vrot.lane.b32.xlu0 %v1883, 64
      %v1904 = vpop.permute.xlu0 %1903
      %1905 = vrot.lane.b32.xlu0 %v1884, 64
      %v1906 = vpop.permute.xlu0 %1905
      %1907 = vrot.lane.b32.xlu0 %v1885, 64
      %v1908 = vpop.permute.xlu0 %1907
      %1909 = vrot.lane.b32.xlu0 %v1886, 64
      %v1910 = vpop.permute.xlu0 %1909
      %v1919 = vadd.f32 %v1839, %v1896
      %v1920 = vadd.f32 %v1840, %v1898
      %v1921 = vadd.f32 %v1841, %v1900
      %v1922 = vadd.f32 %v1842, %v1902
      %v1923 = vadd.f32 %v1843, %v1904
      %v1924 = vadd.f32 %v1844, %v1906
      %v1925 = vadd.f32 %v1845, %v1908
      %v1926 = vadd.f32 %v1846, %v1910
      %1927 = vset.pattern.permute.xlu0 7
      %1928 = vperm.xlu0 %1927, %v1352
      %v1929 = vpop.permute.xlu0 %1928
      %1931 = vset.pattern.permute.xlu0 7
      %1932 = vperm.xlu0 %1931, %v1354
      %v1933 = vpop.permute.xlu0 %1932
      %1935 = vset.pattern.permute.xlu0 7
      %1936 = vperm.xlu0 %1935, %v1356
      %v1937 = vpop.permute.xlu0 %1936
      %1939 = vset.pattern.permute.xlu0 7
      %1940 = vperm.xlu0 %1939, %v1358
      %v1941 = vpop.permute.xlu0 %1940
      %1943 = vset.pattern.permute.xlu0 7
      %1944 = vperm.xlu0 %1943, %v1360
      %v1945 = vpop.permute.xlu0 %1944
      %1947 = vset.pattern.permute.xlu0 7
      %1948 = vperm.xlu0 %1947, %v1362
      %v1949 = vpop.permute.xlu0 %1948
      %1951 = vset.pattern.permute.xlu0 7
      %1952 = vperm.xlu0 %1951, %v1364
      %v1953 = vpop.permute.xlu0 %1952
      %1955 = vset.pattern.permute.xlu0 7
      %1956 = vperm.xlu0 %1955, %v1366
      %v1957 = vpop.permute.xlu0 %1956
      %v1959 = vmul.f32 %v1929, %v774
      %v1960 = vmul.f32 %v1933, %v775
      %v1961 = vmul.f32 %v1937, %v776
      %v1962 = vmul.f32 %v1941, %v777
      %v1963 = vmul.f32 %v1945, %v778
      %v1964 = vmul.f32 %v1949, %v779
      %v1965 = vmul.f32 %v1953, %v780
      %v1966 = vmul.f32 %v1957, %v781
      %1975 = vrot.lane.b32.xlu0 %v1959, 32
      %v1976 = vpop.permute.xlu0 %1975
      %1977 = vrot.lane.b32.xlu0 %v1960, 32
      %v1978 = vpop.permute.xlu0 %1977
      %1979 = vrot.lane.b32.xlu0 %v1961, 32
      %v1980 = vpop.permute.xlu0 %1979
      %1981 = vrot.lane.b32.xlu0 %v1962, 32
      %v1982 = vpop.permute.xlu0 %1981
      %1983 = vrot.lane.b32.xlu0 %v1963, 32
      %v1984 = vpop.permute.xlu0 %1983
      %1985 = vrot.lane.b32.xlu0 %v1964, 32
      %v1986 = vpop.permute.xlu0 %1985
      %1987 = vrot.lane.b32.xlu0 %v1965, 32
      %v1988 = vpop.permute.xlu0 %1987
      %1989 = vrot.lane.b32.xlu0 %v1966, 32
      %v1990 = vpop.permute.xlu0 %1989
      %v1999 = vadd.f32 %v1919, %v1976
      %v2000 = vadd.f32 %v1920, %v1978
      %v2001 = vadd.f32 %v1921, %v1980
      %v2002 = vadd.f32 %v1922, %v1982
      %v2003 = vadd.f32 %v1923, %v1984
      %v2004 = vadd.f32 %v1924, %v1986
      %v2005 = vadd.f32 %v1925, %v1988
      %v2006 = vadd.f32 %v1926, %v1990
      %v2007 = vmul.f32 %v1999, %v1415
      %v2008 = vmul.f32 %v2000, %v1416
      %v2009 = vmul.f32 %v2001, %v1417
      %v2010 = vmul.f32 %v2002, %v1418
      %v2011 = vmul.f32 %v2003, %v1419
      %v2012 = vmul.f32 %v2004, %v1420
      %v2013 = vmul.f32 %v2005, %v1421
      %v2014 = vmul.f32 %v2006, %v1422
      %2015 = vst.msk [vmem:[%s224] sm:$0xff] %vm249, %v2007
      %2016 = vst.msk [vmem:[%s224 + $0x8] sm:$0xff] %vm249, %v2008
      %2017 = vst.msk [vmem:[%s224 + $0x10] sm:$0xff] %vm249, %v2009
      %2018 = vst.msk [vmem:[%s224 + $0x18] sm:$0xff] %vm249, %v2010
      %2019 = vst.msk [vmem:[%s224 + $0x20] sm:$0xff] %vm249, %v2011
      %2020 = vst.msk [vmem:[%s224 + $0x28] sm:$0xff] %vm249, %v2012
      %2021 = vst.msk [vmem:[%s224 + $0x30] sm:$0xff] %vm249, %v2013
      %2022 = vst.msk [vmem:[%s224 + $0x38] sm:$0xff] %vm249, %v2014
      %s2023 = smul.u32 8, %s15
      %p2024 = scmp.lt.s32.totalorder %s2023, 15
      %s2025 = scalar_select %p2024, %s2023, 15
      %s2026 = smul.addr %s2025, 8
      %s2027 = scalar_lea.vmem %s4, %s2026
      // Predicated region
      $region37: #{mask_mlp_attention.1} parent=35 // pred_check
        %p2028 = pneg %p127
      $region38: #{mask_mlp_attention.1} parent=35 // pred_check_branch
        %2030 = sbr.rel (%p2028) target = $region40
      $region39: #{mask_mlp_attention.1} parent=35 // pred_region
        %s2031 = smul.u32 8, %s15
      $region40: #{mask_mlp_attention.1} parent=35 // pred_fallthru
        _
    $region36: #{mask_mlp_attention.1} parent=5 // pred_fallthru
      _
    %p2032 = scmp.le.s32.totalorder 2, %s10
    // Predicated region
    $region41: #{mask_mlp_attention.1} parent=5 // pred_check
      %p2033 = pneg %p2032
    $region42: #{mask_mlp_attention.1} parent=5 // pred_check_branch
      %2035 = sbr.rel (%p2033) target = $region44
    $region43: #{mask_mlp_attention.1} parent=5 // pred_region
      %s2036 = ssub.s32 %s10, 2
      // Predicated region
      $region45: #{mask_mlp_attention.1} parent=43 // pred_check
        %p2037 = pneg %p133
      $region46: #{mask_mlp_attention.1} parent=43 // pred_check_branch
        %2039 = sbr.rel (%p2037) target = $region48
      $region47: #{mask_mlp_attention.1} parent=43 // pred_region
        %s2040 = smul.u32 8, %s16
        %p2041 = scmp.lt.s32.totalorder %s2040, 15
        %s2042 = scalar_select %p2041, %s2040, 15
        %s2043 = smul.addr %s2042, 8
        %s2044 = scalar_lea.vmem %s4, %s2043
      $region48: #{mask_mlp_attention.1} parent=43 // pred_fallthru
        _
    $region44: #{mask_mlp_attention.1} parent=5 // pred_fallthru
      _
  $region6: #{mask_mlp_attention.1} parent=0 // loop_footer
    %s14 = sadd.s32 1, %s10
  $region7: #{mask_mlp_attention.1} parent=0 // loop_footer_branch
    %9 = sbr.rel target = $region3
  $region8: #{mask_mlp_attention.1} parent=0 // loop_exit
    _

</llo_original>
